<compile_context>
chip_gen: v7x
topology: tpu7x:2x2x1
jax: 0.10.0
libtpu: 0.0.40
codegen_flags: <defaults>
</compile_context>

<pallas_src>
import jax
import jax.numpy as jnp
from jax.experimental import pallas as pl
from jax.experimental.pallas import tpu as pltpu


def _round_up(x, m):
    return ((x + m - 1) // m) * m


def _rnn_kernel(cat_ref, x_ref,
                wc_ref, wx_ref, wh_ref, bih_ref,
                woo_ref, boo_ref,
                out_ref,
                px_ref, h_ref):
    Tc, Bc, I = x_ref.shape
    H_pad = h_ref.shape[1]
    HO_pad = wh_ref.shape[1]
    O_pad = out_ref.shape[2]
    mm_dtype = wh_ref.dtype            # matmul operand dtype (f32 or bf16)

    # ---- chunk prologue -----------------------------------------------------
    # (re)initialize the hidden state at the start of every time sweep
    @pl.when(pl.program_id(1) == 0)
    def _():
        h_ref[...] = jnp.zeros_like(h_ref)

    # time-invariant category projection + packed biases: (Bc, HO_pad)
    cat_base = (jnp.dot(cat_ref[...], wc_ref[...],
                        preferred_element_type=jnp.float32)
                + bih_ref[...])

    # batched input projection for the whole chunk, cat_base folded in so the
    # serial loop only adds the recurrent term.
    x2 = x_ref[...].reshape(Tc * Bc, I)                       # tile-aligned (Bc=8k)
    px = jnp.dot(x2, wx_ref[...], preferred_element_type=jnp.float32)
    px_ref[...] = px.reshape(Tc, Bc, HO_pad) + cat_base[None, :, :]

    w_h = wh_ref[...]                                         # (H_pad, HO_pad)

    # ---- serial recurrence: ONE matmul per step -----------------------------
    def step(t, h):
        ho = px_ref[t] + jnp.dot(h.astype(mm_dtype), w_h,
                                 preferred_element_type=jnp.float32)
        px_ref[t] = ho                 # overwrite in place: feeds batched o2o
        return ho[:, :H_pad]           # h_{t+1} (lane-aligned slice)

    h_ref[...] = jax.lax.fori_loop(0, Tc, step, h_ref[...], unroll=True)

    # ---- chunk epilogue: one batched o2o matmul over all Tc steps -----------
    ho_all = px_ref[...].reshape(Tc * Bc, HO_pad)
    res = (jnp.dot(ho_all.astype(mm_dtype), woo_ref[...],
                   preferred_element_type=jnp.float32)
           + boo_ref[...])
    out_ref[...] = res.reshape(Tc, Bc, O_pad).astype(out_ref.dtype)


def rnn_forward(category, inp, params, *, time_chunk=8, batch_chunk=8,
                use_bf16_matmuls=False):
    """category: (B, C), inp: (B, T, I) -> (B*T, O)  (matches PyTorch forward)."""
    B, T, I = inp.shape
    C = category.shape[1]
    H = params["w_h"].shape[0]
    O = params["b_o2o"].shape[-1]
    assert params["w_h"].shape[1] == H + O

    f32 = jnp.float32
    H_pad = _round_up(H, 128)
    O_pad = _round_up(O, 128)
    HO_pad = H_pad + O_pad

    Bc = _round_up(min(batch_chunk, _round_up(B, 8)), 8)
    B_pad = _round_up(B, Bc)
    Tc = max(1, min(time_chunk, T))
    T_pad = _round_up(T, Tc)
    nb, nt = B_pad // Bc, T_pad // Tc

    # ---- pad activations (sublane-multiple batch, zero-padded time) ---------
    cat_p = jnp.zeros((B_pad, C), f32).at[:B].set(category.astype(f32))
    x_tbi = jnp.transpose(inp, (1, 0, 2))                     # (T, B, I)
    # TODO(synk): for large T*B, fold this transpose into the kernel (read a
    # (B, Tc, I) block directly) to avoid the extra HBM pass outside the kernel.
    x_p = jnp.zeros((T_pad, B_pad, I), f32).at[:T, :B].set(x_tbi.astype(f32))

    # ---- pad packed weights to the lane-aligned [h | out] column layout -----
    def pad_cols(w):                                          # (r, H+O) -> (r, HO_pad)
        out = jnp.zeros((w.shape[0], HO_pad), f32)
        out = out.at[:, :H].set(w[:, :H])
        out = out.at[:, H_pad:H_pad + O].set(w[:, H:])
        return out

    w_c = pad_cols(params["w_c"])                             # (C, HO_pad)
    w_x = pad_cols(params["w_x"])                             # (I, HO_pad)
    w_h = jnp.zeros((H_pad, HO_pad), f32).at[:H].set(pad_cols(params["w_h"]))
    b_ih = pad_cols(params["b_ih_io"])                        # (1, HO_pad)
    w_oo = jnp.zeros((HO_pad, O_pad), f32)
    w_oo = w_oo.at[:H, :O].set(params["w_o2o"][:H])
    w_oo = w_oo.at[H_pad:H_pad + O, :O].set(params["w_o2o"][H:])
    b_oo = jnp.zeros((1, O_pad), f32).at[:, :O].set(params["b_o2o"])

    if use_bf16_matmuls:
        bf16 = jnp.bfloat16
        cat_p = cat_p.astype(bf16)
        x_p = x_p.astype(bf16)
        w_c = w_c.astype(bf16)
        w_x = w_x.astype(bf16)
        w_h = w_h.astype(bf16)
        w_oo = w_oo.astype(bf16)

    flops = 2 * T_pad * B_pad * ((C + I + H_pad) * HO_pad + HO_pad * O_pad)
    bytes_acc = 4 * (cat_p.size + x_p.size + w_c.size + w_x.size + w_h.size
                     + b_ih.size + w_oo.size + b_oo.size + T_pad * B_pad * O_pad)

    out = pl.pallas_call(
        _rnn_kernel,
        out_shape=jax.ShapeDtypeStruct((T_pad, B_pad, O_pad), f32),
        grid=(nb, nt),
        in_specs=[
            pl.BlockSpec((Bc, C), lambda b, t: (b, 0)),            # category
            pl.BlockSpec((Tc, Bc, I), lambda b, t: (t, b, 0)),     # inputs chunk
            pl.BlockSpec((C, HO_pad), lambda b, t: (0, 0)),        # [i2h|i2o] cat rows
            pl.BlockSpec((I, HO_pad), lambda b, t: (0, 0)),        # [i2h|i2o] inp rows
            pl.BlockSpec((H_pad, HO_pad), lambda b, t: (0, 0)),    # [i2h|i2o] hid rows
            pl.BlockSpec((1, HO_pad), lambda b, t: (0, 0)),        # [b_i2h|b_i2o]
            pl.BlockSpec((HO_pad, O_pad), lambda b, t: (0, 0)),    # o2o weight
            pl.BlockSpec((1, O_pad), lambda b, t: (0, 0)),         # o2o bias
        ],
        out_specs=pl.BlockSpec((Tc, Bc, O_pad), lambda b, t: (t, b, 0)),
        scratch_shapes=[
            pltpu.VMEM((Tc, Bc, HO_pad), jnp.float32),   # px / ho buffer
            pltpu.VMEM((Bc, H_pad), jnp.float32),        # hidden-state carry
        ],
        compiler_params=pltpu.CompilerParams(
            dimension_semantics=("parallel", "arbitrary")),
        cost_estimate=pl.CostEstimate(flops=flops, transcendentals=0,
                                      bytes_accessed=bytes_acc),
    )(cat_p, x_p, w_c, w_x, w_h, b_ih, w_oo, b_oo)

    out = out[:T, :B, :O]                                    # strip padding
    # (T, B, O) -> (B, T, O) -> (B*T, O)  == torch.stack(res, 1).view(-1, O)
    return jnp.transpose(out, (1, 0, 2)).reshape(B * T, O)


def init_params(key, n_categories, input_size, hidden_size, output_size):
    """Deterministic init; weights stored (in_features, out_features), with
    i2h / i2o packed along the output dim so x @ W_full = [h_new | out]."""
    C, I, H, O = n_categories, input_size, hidden_size, output_size
    keys = jax.random.split(key, 6)

    def uni(k, shape, fan_in):
        bound = 1.0 / jnp.sqrt(fan_in)
        return jax.random.uniform(k, shape, jnp.float32, -bound, bound)

    fan_ih = C + I + H
    w_i2h = uni(keys[0], (fan_ih, H), fan_ih)
    w_i2o = uni(keys[1], (fan_ih, O), fan_ih)
    fan_oo = H + O
    w_o2o = uni(keys[2], (fan_oo, O), fan_oo)
    b_i2h = uni(keys[3], (1, H), fan_ih)
    b_i2o = uni(keys[4], (1, O), fan_ih)
    b_o2o = uni(keys[5], (1, O), fan_oo)

    w_full = jnp.concatenate([w_i2h, w_i2o], axis=1)          # (C+I+H, H+O)
    return {
        "w_c": w_full[:C],                                    # (C, H+O)
        "w_x": w_full[C:C + I],                               # (I, H+O)
        "w_h": w_full[C + I:],                                # (H, H+O)
        "b_ih_io": jnp.concatenate([b_i2h, b_i2o], axis=1),   # (1, H+O)
        "w_o2o": w_o2o,                                       # (H+O, O)
        "b_o2o": b_o2o,                                       # (1, O)
    }


def rnn_reference(category, inp, params):
    """Pure-JAX reference mirroring the PyTorch forward (explicit concats)."""
    B, T, _ = inp.shape
    H = params["w_h"].shape[0]
    w_full = jnp.concatenate([params["w_c"], params["w_x"], params["w_h"]], axis=0)
    w_i2h, w_i2o = w_full[:, :H], w_full[:, H:]
    b_i2h, b_i2o = params["b_ih_io"][:, :H], params["b_ih_io"][:, H:]
    h = jnp.zeros((B, H), jnp.float32)
    res = []
    for t in range(T):
        combined = jnp.concatenate([category, inp[:, t], h], axis=1)
        h_new = combined @ w_i2h + b_i2h
        out = combined @ w_i2o + b_i2o
        res.append(jnp.concatenate([h_new, out], axis=1) @ params["w_o2o"]
                   + params["b_o2o"])
        h = h_new
    return jnp.stack(res, axis=1).reshape(B * T, -1)


if __name__ == "__main__":
    B, T = 2, 8
    n_categories, input_size, hidden_size, output_size = 4, 16, 32, 16

    key = jax.random.PRNGKey(0)
    k_cat, k_inp, k_par = jax.random.split(key, 3)

    category = jax.random.normal(k_cat, (B, n_categories), jnp.float32)
    inp = jax.random.normal(k_inp, (B, T, input_size), jnp.float32)
    params = init_params(k_par, n_categories, input_size, hidden_size, output_size)

    # time_chunk=4 -> 2 time-chunks in the grid, exercising the hidden-state
    # carry across grid iterations.
    out = jax.block_until_ready(
        rnn_forward(category, inp, params, time_chunk=4))
    assert out.shape == (B * T, output_size)

    ref = rnn_reference(category, inp, params)
    assert jnp.allclose(out, ref, atol=1e-4, rtol=1e-4), "mismatch vs reference"

    print("KERNEL_OK")
</pallas_src>

<mosaic_0001>
module attributes {stable_mosaic.version = 11 : i64} {
  func.func @_rnn_kernel(%arg0: i32, %arg1: i32, %arg2: memref<8x4xf32, #tpu.memory_space<vmem>>, %arg3: memref<4x8x16xf32, #tpu.memory_space<vmem>>, %arg4: memref<4x256xf32, #tpu.memory_space<vmem>>, %arg5: memref<16x256xf32, #tpu.memory_space<vmem>>, %arg6: memref<128x256xf32, #tpu.memory_space<vmem>>, %arg7: memref<1x256xf32, #tpu.memory_space<vmem>>, %arg8: memref<256x128xf32, #tpu.memory_space<vmem>>, %arg9: memref<1x128xf32, #tpu.memory_space<vmem>>, %arg10: memref<4x8x128xf32, #tpu.memory_space<vmem>>, %arg11: memref<4x8x256xf32, #tpu.memory_space<vmem>>, %arg12: memref<8x128xf32, #tpu.memory_space<vmem>>) attributes {dimension_semantics = [#tpu.dimension_semantics<parallel>, #tpu.dimension_semantics<arbitrary>], iteration_bounds = array<i64: 1, 2>, scalar_prefetch = 0 : i64, scratch_operands = 2 : i64, tpu.core_type = #tpu.core_type<tc>, window_params = [{transform_indices = @transform_0, window_bounds = array<i64: 8, 4>}, {transform_indices = @transform_1, window_bounds = array<i64: 4, 8, 16>}, {pipeline_mode = #tpu.pipeline_mode<synchronous>, transform_indices = @transform_2, window_bounds = array<i64: 4, 256>}, {pipeline_mode = #tpu.pipeline_mode<synchronous>, transform_indices = @transform_3, window_bounds = array<i64: 16, 256>}, {pipeline_mode = #tpu.pipeline_mode<synchronous>, transform_indices = @transform_4, window_bounds = array<i64: 128, 256>}, {pipeline_mode = #tpu.pipeline_mode<synchronous>, transform_indices = @transform_5, window_bounds = array<i64: 1, 256>}, {pipeline_mode = #tpu.pipeline_mode<synchronous>, transform_indices = @transform_6, window_bounds = array<i64: 256, 128>}, {pipeline_mode = #tpu.pipeline_mode<synchronous>, transform_indices = @transform_7, window_bounds = array<i64: 1, 128>}, {transform_indices = @transform_8, window_bounds = array<i64: 4, 8, 128>}]} {
    %c0_i32 = arith.constant 0 : i32
    %0 = arith.cmpi eq, %arg1, %c0_i32 : i32
    %1 = arith.extui %0 : i1 to i32
    %c0_i32_0 = arith.constant 0 : i32
    %2 = arith.cmpi ne, %1, %c0_i32_0 : i32
    scf.if %2 {
      %cst_53 = arith.constant 0.000000e+00 : f32
      %70 = vector.broadcast %cst_53 : f32 to vector<8x128xf32>
      %c0_54 = arith.constant 0 : index
      %c0_55 = arith.constant 0 : index
      %71 = vector.load %arg12[%c0_54, %c0_55] : memref<8x128xf32, #tpu.memory_space<vmem>>, vector<8x128xf32>
      tpu.vector_store %arg12[%c0_54, %c0_55], %70 {strides = array<i32>} : memref<8x128xf32, #tpu.memory_space<vmem>>, vector<8x128xf32>,
    } else {
    }
    %c0 = arith.constant 0 : index
    %c0_1 = arith.constant 0 : index
    %3 = vector.load %arg2[%c0, %c0_1] : memref<8x4xf32, #tpu.memory_space<vmem>>, vector<8x4xf32>
    %c0_2 = arith.constant 0 : index
    %c0_3 = arith.constant 0 : index
    %4 = vector.load %arg4[%c0_2, %c0_3] : memref<4x256xf32, #tpu.memory_space<vmem>>, vector<4x256xf32>
    %cst = arith.constant dense<0.000000e+00> : vector<8x256xf32>
    %5 = tpu.matmul %3, %4, %cst {dimension_numbers = #tpu.dot_dimension_numbers<[1], [0], [0], [1], [0, 0, 1, 1], [], []>} : vector<8x4xf32>, vector<4x256xf32>, vector<8x256xf32> -> vector<8x256xf32>
    %c0_4 = arith.constant 0 : index
    %c0_5 = arith.constant 0 : index
    %6 = vector.load %arg7[%c0_4, %c0_5] : memref<1x256xf32, #tpu.memory_space<vmem>>, vector<1x256xf32>
    %7 = vector.broadcast %6 : vector<1x256xf32> to vector<8x256xf32>
    %8 = arith.addf %5, %7 : vector<8x256xf32>
    %c0_6 = arith.constant 0 : index
    %c0_7 = arith.constant 0 : index
    %c0_8 = arith.constant 0 : index
    %9 = vector.load %arg3[%c0_6, %c0_7, %c0_8] : memref<4x8x16xf32, #tpu.memory_space<vmem>>, vector<4x8x16xf32>
    %10 = vector.shape_cast %9 : vector<4x8x16xf32> to vector<32x16xf32>
    %c0_9 = arith.constant 0 : index
    %c0_10 = arith.constant 0 : index
    %11 = vector.load %arg5[%c0_9, %c0_10] : memref<16x256xf32, #tpu.memory_space<vmem>>, vector<16x256xf32>
    %cst_11 = arith.constant dense<0.000000e+00> : vector<32x256xf32>
    %12 = tpu.matmul %10, %11, %cst_11 {dimension_numbers = #tpu.dot_dimension_numbers<[1], [0], [0], [1], [0, 0, 1, 1], [], []>} : vector<32x16xf32>, vector<16x256xf32>, vector<32x256xf32> -> vector<32x256xf32>
    %13 = vector.shape_cast %12 : vector<32x256xf32> to vector<4x8x256xf32>
    %14 = vector.shape_cast %8 : vector<8x256xf32> to vector<1x8x256xf32>
    %15 = vector.broadcast %14 : vector<1x8x256xf32> to vector<4x8x256xf32>
    %16 = arith.addf %13, %15 : vector<4x8x256xf32>
    %c0_12 = arith.constant 0 : index
    %c0_13 = arith.constant 0 : index
    %c0_14 = arith.constant 0 : index
    %17 = vector.load %arg11[%c0_12, %c0_13, %c0_14] : memref<4x8x256xf32, #tpu.memory_space<vmem>>, vector<4x8x256xf32>
    tpu.vector_store %arg11[%c0_12, %c0_13, %c0_14], %16 {strides = array<i32>} : memref<4x8x256xf32, #tpu.memory_space<vmem>>, vector<4x8x256xf32>,
    %c0_15 = arith.constant 0 : index
    %c0_16 = arith.constant 0 : index
    %18 = vector.load %arg6[%c0_15, %c0_16] : memref<128x256xf32, #tpu.memory_space<vmem>>, vector<128x256xf32>
    %c0_17 = arith.constant 0 : index
    %c0_18 = arith.constant 0 : index
    %19 = vector.load %arg12[%c0_17, %c0_18] : memref<8x128xf32, #tpu.memory_space<vmem>>, vector<8x128xf32>
    %c0_i32_19 = arith.constant 0 : i32
    %20 = arith.index_cast %c0_i32_19 : i32 to index
    %c0_20 = arith.constant 0 : index
    %c0_21 = arith.constant 0 : index
    %21 = vector.load %arg11[%20, %c0_20, %c0_21] : memref<4x8x256xf32, #tpu.memory_space<vmem>>, vector<1x8x256xf32>
    %22 = vector.shape_cast %21 : vector<1x8x256xf32> to vector<8x256xf32>
    %cst_22 = arith.constant dense<0.000000e+00> : vector<8x256xf32>
    %23 = tpu.matmul %19, %18, %cst_22 {dimension_numbers = #tpu.dot_dimension_numbers<[1], [0], [0], [1], [0, 0, 1, 1], [], []>} : vector<8x128xf32>, vector<128x256xf32>, vector<8x256xf32> -> vector<8x256xf32>
    %24 = arith.addf %22, %23 : vector<8x256xf32>
    %25 = arith.index_cast %c0_i32_19 : i32 to index
    %c0_23 = arith.constant 0 : index
    %c0_24 = arith.constant 0 : index
    %26 = vector.load %arg11[%25, %c0_23, %c0_24] : memref<4x8x256xf32, #tpu.memory_space<vmem>>, vector<1x8x256xf32>
    %27 = vector.shape_cast %26 : vector<1x8x256xf32> to vector<8x256xf32>
    %28 = vector.shape_cast %24 : vector<8x256xf32> to vector<1x8x256xf32>
    tpu.vector_store %arg11[%25, %c0_23, %c0_24], %28 {strides = array<i32>} : memref<4x8x256xf32, #tpu.memory_space<vmem>>, vector<1x8x256xf32>,
    %29 = vector.extract_strided_slice %24 {offsets = [0, 0], sizes = [8, 128], strides = [1, 1]} : vector<8x256xf32> to vector<8x128xf32>
    %c1_i32 = arith.constant 1 : i32
    %30 = arith.index_cast %c1_i32 : i32 to index
    %c0_25 = arith.constant 0 : index
    %c0_26 = arith.constant 0 : index
    %31 = vector.load %arg11[%30, %c0_25, %c0_26] : memref<4x8x256xf32, #tpu.memory_space<vmem>>, vector<1x8x256xf32>
    %32 = vector.shape_cast %31 : vector<1x8x256xf32> to vector<8x256xf32>
    %cst_27 = arith.constant dense<0.000000e+00> : vector<8x256xf32>
    %33 = tpu.matmul %29, %18, %cst_27 {dimension_numbers = #tpu.dot_dimension_numbers<[1], [0], [0], [1], [0, 0, 1, 1], [], []>} : vector<8x128xf32>, vector<128x256xf32>, vector<8x256xf32> -> vector<8x256xf32>
    %34 = arith.addf %32, %33 : vector<8x256xf32>
    %35 = arith.index_cast %c1_i32 : i32 to index
    %c0_28 = arith.constant 0 : index
    %c0_29 = arith.constant 0 : index
    %36 = vector.load %arg11[%35, %c0_28, %c0_29] : memref<4x8x256xf32, #tpu.memory_space<vmem>>, vector<1x8x256xf32>
    %37 = vector.shape_cast %36 : vector<1x8x256xf32> to vector<8x256xf32>
    %38 = vector.shape_cast %34 : vector<8x256xf32> to vector<1x8x256xf32>
    tpu.vector_store %arg11[%35, %c0_28, %c0_29], %38 {strides = array<i32>} : memref<4x8x256xf32, #tpu.memory_space<vmem>>, vector<1x8x256xf32>,
    %39 = vector.extract_strided_slice %34 {offsets = [0, 0], sizes = [8, 128], strides = [1, 1]} : vector<8x256xf32> to vector<8x128xf32>
    %c2_i32 = arith.constant 2 : i32
    %40 = arith.index_cast %c2_i32 : i32 to index
    %c0_30 = arith.constant 0 : index
    %c0_31 = arith.constant 0 : index
    %41 = vector.load %arg11[%40, %c0_30, %c0_31] : memref<4x8x256xf32, #tpu.memory_space<vmem>>, vector<1x8x256xf32>
    %42 = vector.shape_cast %41 : vector<1x8x256xf32> to vector<8x256xf32>
    %cst_32 = arith.constant dense<0.000000e+00> : vector<8x256xf32>
    %43 = tpu.matmul %39, %18, %cst_32 {dimension_numbers = #tpu.dot_dimension_numbers<[1], [0], [0], [1], [0, 0, 1, 1], [], []>} : vector<8x128xf32>, vector<128x256xf32>, vector<8x256xf32> -> vector<8x256xf32>
    %44 = arith.addf %42, %43 : vector<8x256xf32>
    %45 = arith.index_cast %c2_i32 : i32 to index
    %c0_33 = arith.constant 0 : index
    %c0_34 = arith.constant 0 : index
    %46 = vector.load %arg11[%45, %c0_33, %c0_34] : memref<4x8x256xf32, #tpu.memory_space<vmem>>, vector<1x8x256xf32>
    %47 = vector.shape_cast %46 : vector<1x8x256xf32> to vector<8x256xf32>
    %48 = vector.shape_cast %44 : vector<8x256xf32> to vector<1x8x256xf32>
    tpu.vector_store %arg11[%45, %c0_33, %c0_34], %48 {strides = array<i32>} : memref<4x8x256xf32, #tpu.memory_space<vmem>>, vector<1x8x256xf32>,
    %49 = vector.extract_strided_slice %44 {offsets = [0, 0], sizes = [8, 128], strides = [1, 1]} : vector<8x256xf32> to vector<8x128xf32>
    %c3_i32 = arith.constant 3 : i32
    %50 = arith.index_cast %c3_i32 : i32 to index
    %c0_35 = arith.constant 0 : index
    %c0_36 = arith.constant 0 : index
    %51 = vector.load %arg11[%50, %c0_35, %c0_36] : memref<4x8x256xf32, #tpu.memory_space<vmem>>, vector<1x8x256xf32>
    %52 = vector.shape_cast %51 : vector<1x8x256xf32> to vector<8x256xf32>
    %cst_37 = arith.constant dense<0.000000e+00> : vector<8x256xf32>
    %53 = tpu.matmul %49, %18, %cst_37 {dimension_numbers = #tpu.dot_dimension_numbers<[1], [0], [0], [1], [0, 0, 1, 1], [], []>} : vector<8x128xf32>, vector<128x256xf32>, vector<8x256xf32> -> vector<8x256xf32>
    %54 = arith.addf %52, %53 : vector<8x256xf32>
    %55 = arith.index_cast %c3_i32 : i32 to index
    %c0_38 = arith.constant 0 : index
    %c0_39 = arith.constant 0 : index
    %56 = vector.load %arg11[%55, %c0_38, %c0_39] : memref<4x8x256xf32, #tpu.memory_space<vmem>>, vector<1x8x256xf32>
    %57 = vector.shape_cast %56 : vector<1x8x256xf32> to vector<8x256xf32>
    %58 = vector.shape_cast %54 : vector<8x256xf32> to vector<1x8x256xf32>
    tpu.vector_store %arg11[%55, %c0_38, %c0_39], %58 {strides = array<i32>} : memref<4x8x256xf32, #tpu.memory_space<vmem>>, vector<1x8x256xf32>,
    %59 = vector.extract_strided_slice %54 {offsets = [0, 0], sizes = [8, 128], strides = [1, 1]} : vector<8x256xf32> to vector<8x128xf32>
    %c4_i32 = arith.constant 4 : i32
    %c0_40 = arith.constant 0 : index
    %c0_41 = arith.constant 0 : index
    %60 = vector.load %arg12[%c0_40, %c0_41] : memref<8x128xf32, #tpu.memory_space<vmem>>, vector<8x128xf32>
    tpu.vector_store %arg12[%c0_40, %c0_41], %59 {strides = array<i32>} : memref<8x128xf32, #tpu.memory_space<vmem>>, vector<8x128xf32>,
    %c0_42 = arith.constant 0 : index
    %c0_43 = arith.constant 0 : index
    %c0_44 = arith.constant 0 : index
    %61 = vector.load %arg11[%c0_42, %c0_43, %c0_44] : memref<4x8x256xf32, #tpu.memory_space<vmem>>, vector<4x8x256xf32>
    %62 = vector.shape_cast %61 : vector<4x8x256xf32> to vector<32x256xf32>
    %c0_45 = arith.constant 0 : index
    %c0_46 = arith.constant 0 : index
    %63 = vector.load %arg8[%c0_45, %c0_46] : memref<256x128xf32, #tpu.memory_space<vmem>>, vector<256x128xf32>
    %cst_47 = arith.constant dense<0.000000e+00> : vector<32x128xf32>
    %64 = tpu.matmul %62, %63, %cst_47 {dimension_numbers = #tpu.dot_dimension_numbers<[1], [0], [0], [1], [0, 0, 1, 1], [], []>} : vector<32x256xf32>, vector<256x128xf32>, vector<32x128xf32> -> vector<32x128xf32>
    %c0_48 = arith.constant 0 : index
    %c0_49 = arith.constant 0 : index
    %65 = vector.load %arg9[%c0_48, %c0_49] : memref<1x128xf32, #tpu.memory_space<vmem>>, vector<1x128xf32>
    %66 = vector.broadcast %65 : vector<1x128xf32> to vector<32x128xf32>
    %67 = arith.addf %64, %66 : vector<32x128xf32>
    %68 = vector.shape_cast %67 : vector<32x128xf32> to vector<4x8x128xf32>
    %c0_50 = arith.constant 0 : index
    %c0_51 = arith.constant 0 : index
    %c0_52 = arith.constant 0 : index
    %69 = vector.load %arg10[%c0_50, %c0_51, %c0_52] : memref<4x8x128xf32, #tpu.memory_space<vmem>>, vector<4x8x128xf32>
    tpu.vector_store %arg10[%c0_50, %c0_51, %c0_52], %68 {strides = array<i32>} : memref<4x8x128xf32, #tpu.memory_space<vmem>>, vector<4x8x128xf32>,
    return
  }
  func.func @transform_0(%arg0: i32, %arg1: i32) -> (i32, i32) {
    %c0_i32 = arith.constant 0 : i32
    %c0_i32_0 = arith.constant 0 : i32
    return %arg0, %c0_i32 : i32, i32
  }
  func.func @transform_1(%arg0: i32, %arg1: i32) -> (i32, i32, i32) {
    %c0_i32 = arith.constant 0 : i32
    %c0_i32_0 = arith.constant 0 : i32
    return %arg1, %arg0, %c0_i32 : i32, i32, i32
  }
  func.func @transform_2(%arg0: i32, %arg1: i32) -> (i32, i32) {
    %c0_i32 = arith.constant 0 : i32
    %c0_i32_0 = arith.constant 0 : i32
    %c0_i32_1 = arith.constant 0 : i32
    return %c0_i32, %c0_i32_0 : i32, i32
  }
  func.func @transform_3(%arg0: i32, %arg1: i32) -> (i32, i32) {
    %c0_i32 = arith.constant 0 : i32
    %c0_i32_0 = arith.constant 0 : i32
    %c0_i32_1 = arith.constant 0 : i32
    return %c0_i32, %c0_i32_0 : i32, i32
  }
  func.func @transform_4(%arg0: i32, %arg1: i32) -> (i32, i32) {
    %c0_i32 = arith.constant 0 : i32
    %c0_i32_0 = arith.constant 0 : i32
    %c0_i32_1 = arith.constant 0 : i32
    return %c0_i32, %c0_i32_0 : i32, i32
  }
  func.func @transform_5(%arg0: i32, %arg1: i32) -> (i32, i32) {
    %c0_i32 = arith.constant 0 : i32
    %c0_i32_0 = arith.constant 0 : i32
    %c0_i32_1 = arith.constant 0 : i32
    return %c0_i32, %c0_i32_0 : i32, i32
  }
  func.func @transform_6(%arg0: i32, %arg1: i32) -> (i32, i32) {
    %c0_i32 = arith.constant 0 : i32
    %c0_i32_0 = arith.constant 0 : i32
    %c0_i32_1 = arith.constant 0 : i32
    return %c0_i32, %c0_i32_0 : i32, i32
  }
  func.func @transform_7(%arg0: i32, %arg1: i32) -> (i32, i32) {
    %c0_i32 = arith.constant 0 : i32
    %c0_i32_0 = arith.constant 0 : i32
    %c0_i32_1 = arith.constant 0 : i32
    return %c0_i32, %c0_i32_0 : i32, i32
  }
  func.func @transform_8(%arg0: i32, %arg1: i32) -> (i32, i32, i32) {
    %c0_i32 = arith.constant 0 : i32
    %c0_i32_0 = arith.constant 0 : i32
    return %arg1, %arg0, %c0_i32 : i32, i32, i32
  }
}

</mosaic_0001>

<llo_original>
// kernel: tpu_custom_call.1
$region0: #{tpu_custom_call.1}
  #allocation0 [shape = 'u32[]', space=smem, size = 0x4, offset = 0x4, fixed_abs, tag = 'smem constant byte address 0x4 - core index']
  #allocation1 [shape = 'u32[144,128]{1,0:T(1,128)}', space=vmem, size = 0x12000, scoped, tag = 'internal scratch']
  #allocation2 [shape = 'f32[4,8,256]{2,1,0:T(8,128)}', space=vmem, size = 0x8000, scoped, tag = 'scratch operand']
  #allocation3 [shape = 'f32[8,128]{1,0:T(8,128)}', space=vmem, size = 0x1000, scoped, tag = 'scratch operand']
  %s0 = inlined_call_operand.vmem [shape: f32[8,4], index: 0, kind: input, shape index: {}]
  %s1 = inlined_call_operand.hbm [shape: f32[8,8,16], index: 1, kind: input, shape index: {}]
  %s2 = inlined_call_operand.vmem [shape: f32[4,256], index: 2, kind: input, shape index: {}]
  %s3 = inlined_call_operand.hbm [shape: f32[16,256], index: 3, kind: input, shape index: {}]
  %s4 = inlined_call_operand.hbm [shape: f32[128,256], index: 4, kind: input, shape index: {}]
  %s5 = inlined_call_operand.vmem [shape: f32[1,256], index: 5, kind: input, shape index: {}]
  %s6 = inlined_call_operand.hbm [shape: f32[256,128], index: 6, kind: input, shape index: {}]
  %s7 = inlined_call_operand.vmem [shape: f32[1,128], index: 7, kind: input, shape index: {}]
  %s8 = inlined_call_operand.hbm [shape: f32[8,8,128], index: 8, kind: output, shape index: {}]
  %s9 = sld [smem:[#allocation0]]
  $region85: #{tpu_custom_call.1} parent=0
    _
  %s11 = ssub.s32 1, %s9
  %s12 = scalar_select 0, %s11, %s9
  $region1: #{tpu_custom_call.1} parent=0
    #allocation4 [shape = 'u8[32768]{0}', space=vmem, size = 0x8000, scoped, tag = 'input window, operand 1']
    #allocation5 [shape = 's32[2]{0}', space=sflag, size = 0x8, scoped, tag = 'scoped memory for tpu_custom_call.1']
    #allocation6 [shape = 's32[2]{0}', space=sflag, size = 0x8, scoped, tag = 'scoped memory for tpu_custom_call.1']
    #allocation7 [shape = 'u8[16384]{0}', space=vmem, size = 0x4000, scoped, tag = 'input window, operand 3, single buffered']
    #allocation8 [shape = 's32[1]{0}', space=sflag, size = 0x4, scoped, tag = 'scoped memory for tpu_custom_call.1']
    #allocation9 [shape = 'u8[131072]{0}', space=vmem, size = 0x20000, scoped, tag = 'input window, operand 4, single buffered']
    #allocation10 [shape = 'u8[131072]{0}', space=vmem, size = 0x20000, scoped, tag = 'input window, operand 6, single buffered']
    #allocation11 [shape = 's32[1]{0}', space=sflag, size = 0x4, scoped, tag = 'scoped memory for tpu_custom_call.1']
    #allocation12 [shape = 'u8[32768]{0}', space=vmem, size = 0x8000, scoped, tag = 'output window, operand 0']
    %13 = vsyncpa [#allocation5], 0
    %s14 = scalar_lea.sflag [#allocation5], 1
    %15 = vsyncpa %s14, 0
    %16 = vsyncpa [#allocation8], 0
    %17 = vsyncpa [#allocation11], 0
    %18 = vsyncpa [#allocation6], 0
    %s19 = scalar_lea.sflag [#allocation6], 1
    %20 = vsyncpa %s19, 0
    loop: start=0, step=1, limit=4
    $region2: #{tpu_custom_call.1} parent=1 // loop_pre_header
      _
    $region3: #{tpu_custom_call.1} parent=1 // loop_header
      %s22 = sphi 0, %s26
      %p23 = scmp.ge.s32.totalorder %s22, 4
      %s29 = sphi 0, %s41
      %s30 = sphi 0, %s37
      %s31 = sphi 0, %s29
      %s32 = sphi 0, %s30
      %s33 = sphi 0, %s31
      %s34 = sphi 0, %s32
      %s44 = sphi 0, %s46
      %s47 = sphi 0, %s44
      %s48 = sphi 0, %s47
      %s64 = sphi 0, %s48
      %s72 = sphi 0, %s74
      %s75 = sphi 0, %s72
      %s76 = sphi 0, %s75
      %s92 = sphi 0, %s76
      %s96 = sphi 0, %s96
      %s98 = sphi 0, %s96
      %s99 = sphi 0, %s98
      %s113 = sphi 0, %s99
      %s117 = sphi 0, %s117
      %s119 = sphi 0, %s117
      %s120 = sphi 0, %s119
      %s134 = sphi 0, %s120
      %s138 = sphi 0, %s138
      %s140 = sphi 0, %s138
      %s141 = sphi 0, %s140
      %s155 = sphi 0, %s141
      %s159 = sphi 0, %s159
      %s161 = sphi 0, %s159
      %s162 = sphi 0, %s161
      %s176 = sphi 0, %s162
      %s180 = sphi 0, %s180
      %s182 = sphi 0, %s180
      %s183 = sphi 0, %s182
      %s197 = sphi 0, %s183
      %s201 = sphi 0, %s201
      %s203 = sphi 0, %s201
      %s204 = sphi 0, %s203
      %s218 = sphi 0, %s204
      %s226 = sphi 0, %s228
      %s229 = sphi 0, %s226
      %s230 = sphi 0, %s229
      %s246 = sphi 0, %s230
    $region4: #{tpu_custom_call.1} parent=1 // loop_header_branch
      %25 = sbr.rel (%p23) target = $region8
    $region5: #{tpu_custom_call.1} parent=1 // loop_body
      %s27 = ssub.s32 %s22, 1
      %s28 = ssub.s32 %s22, 2
      %s35 = sadd.s32 1, %s30
      %p36 = scmp.ge.s32.totalorder %s35, 2
      %s37 = scalar_select %p36, 0, %s35
      %s38 = sadd.s32 1, %s29
      %s39 = scalar_select %p36, %s38, %s29
      %p40 = scmp.ge.s32.totalorder %s39, 1
      %s41 = scalar_select %p40, 0, %s39
      %s42 = ssub.s32 %s29, %s41
      %p43 = scmp.eq.s32.totalorder %s42, 0
      %s45 = sadd.s32 %s44, 1
      %s46 = scalar_select %p43, %s44, %s45
      %p49 = pneg %p43
      %p50 = scmp.eq.s32.totalorder %s22, 1
      %p51 = por %p49, %p50
      %p52 = scmp.ne.s32.totalorder %s44, %s47
      %p53 = scmp.eq.s32.totalorder %s22, 0
      %p54 = por %p52, %p53
      %p55 = scmp.ne.s32.totalorder %s44, %s47
      %p56 = scmp.eq.s32.totalorder %s27, 1
      %p57 = por %p55, %p56
      %p58 = scmp.ne.s32.totalorder %s47, %s48
      %p59 = scmp.eq.s32.totalorder %s27, 0
      %p60 = por %p58, %p59
      %p61 = scmp.ne.s32.totalorder %s47, %s48
      %p62 = scmp.eq.s32.totalorder %s28, 1
      %p63 = por %p61, %p62
      %p65 = scmp.ne.s32.totalorder %s48, %s64
      %p66 = scmp.eq.s32.totalorder %s28, 0
      %p67 = por %p65, %p66
      %s68 = ssub.s32 %s30, %s37
      %s69 = ssub.s32 %s29, %s41
      %s70 = sor.u32 %s68, %s69
      %p71 = scmp.eq.s32.totalorder %s70, 0
      %s73 = sadd.s32 %s72, 1
      %s74 = scalar_select %p71, %s72, %s73
      %p77 = pneg %p71
      %p78 = scmp.eq.s32.totalorder %s22, 1
      %p79 = por %p77, %p78
      %p80 = scmp.ne.s32.totalorder %s72, %s75
      %p81 = scmp.eq.s32.totalorder %s22, 0
      %p82 = por %p80, %p81
      %p83 = scmp.ne.s32.totalorder %s72, %s75
      %p84 = scmp.eq.s32.totalorder %s27, 1
      %p85 = por %p83, %p84
      %p86 = scmp.ne.s32.totalorder %s75, %s76
      %p87 = scmp.eq.s32.totalorder %s27, 0
      %p88 = por %p86, %p87
      %p89 = scmp.ne.s32.totalorder %s75, %s76
      %p90 = scmp.eq.s32.totalorder %s28, 1
      %p91 = por %p89, %p90
      %p93 = scmp.ne.s32.totalorder %s76, %s92
      %p94 = scmp.eq.s32.totalorder %s28, 0
      %p95 = por %p93, %p94
      %s97 = sadd.s32 %s96, 1
      %p100 = scmp.eq.s32.totalorder %s22, 1
      %p101 = scmp.ne.s32.totalorder %s96, %s98
      %p102 = scmp.eq.s32.totalorder %s22, 0
      %p103 = por %p101, %p102
      %p104 = scmp.ne.s32.totalorder %s96, %s98
      %p105 = scmp.eq.s32.totalorder %s27, 1
      %p106 = por %p104, %p105
      %p107 = scmp.ne.s32.totalorder %s98, %s99
      %p108 = scmp.eq.s32.totalorder %s27, 0
      %p109 = por %p107, %p108
      %p110 = scmp.ne.s32.totalorder %s98, %s99
      %p111 = scmp.eq.s32.totalorder %s28, 1
      %p112 = por %p110, %p111
      %p114 = scmp.ne.s32.totalorder %s99, %s113
      %p115 = scmp.eq.s32.totalorder %s28, 0
      %p116 = por %p114, %p115
      %s118 = sadd.s32 %s117, 1
      %p121 = scmp.eq.s32.totalorder %s22, 1
      %p122 = scmp.ne.s32.totalorder %s117, %s119
      %p123 = scmp.eq.s32.totalorder %s22, 0
      %p124 = por %p122, %p123
      %p125 = scmp.ne.s32.totalorder %s117, %s119
      %p126 = scmp.eq.s32.totalorder %s27, 1
      %p127 = por %p125, %p126
      %p128 = scmp.ne.s32.totalorder %s119, %s120
      %p129 = scmp.eq.s32.totalorder %s27, 0
      %p130 = por %p128, %p129
      %p131 = scmp.ne.s32.totalorder %s119, %s120
      %p132 = scmp.eq.s32.totalorder %s28, 1
      %p133 = por %p131, %p132
      %p135 = scmp.ne.s32.totalorder %s120, %s134
      %p136 = scmp.eq.s32.totalorder %s28, 0
      %p137 = por %p135, %p136
      %s139 = sadd.s32 %s138, 1
      %p142 = scmp.eq.s32.totalorder %s22, 1
      %p143 = scmp.ne.s32.totalorder %s138, %s140
      %p144 = scmp.eq.s32.totalorder %s22, 0
      %p145 = por %p143, %p144
      %p146 = scmp.ne.s32.totalorder %s138, %s140
      %p147 = scmp.eq.s32.totalorder %s27, 1
      %p148 = por %p146, %p147
      %p149 = scmp.ne.s32.totalorder %s140, %s141
      %p150 = scmp.eq.s32.totalorder %s27, 0
      %p151 = por %p149, %p150
      %p152 = scmp.ne.s32.totalorder %s140, %s141
      %p153 = scmp.eq.s32.totalorder %s28, 1
      %p154 = por %p152, %p153
      %p156 = scmp.ne.s32.totalorder %s141, %s155
      %p157 = scmp.eq.s32.totalorder %s28, 0
      %p158 = por %p156, %p157
      %s160 = sadd.s32 %s159, 1
      %p163 = scmp.eq.s32.totalorder %s22, 1
      %p164 = scmp.ne.s32.totalorder %s159, %s161
      %p165 = scmp.eq.s32.totalorder %s22, 0
      %p166 = por %p164, %p165
      %p167 = scmp.ne.s32.totalorder %s159, %s161
      %p168 = scmp.eq.s32.totalorder %s27, 1
      %p169 = por %p167, %p168
      %p170 = scmp.ne.s32.totalorder %s161, %s162
      %p171 = scmp.eq.s32.totalorder %s27, 0
      %p172 = por %p170, %p171
      %p173 = scmp.ne.s32.totalorder %s161, %s162
      %p174 = scmp.eq.s32.totalorder %s28, 1
      %p175 = por %p173, %p174
      %p177 = scmp.ne.s32.totalorder %s162, %s176
      %p178 = scmp.eq.s32.totalorder %s28, 0
      %p179 = por %p177, %p178
      %s181 = sadd.s32 %s180, 1
      %p184 = scmp.eq.s32.totalorder %s22, 1
      %p185 = scmp.ne.s32.totalorder %s180, %s182
      %p186 = scmp.eq.s32.totalorder %s22, 0
      %p187 = por %p185, %p186
      %p188 = scmp.ne.s32.totalorder %s180, %s182
      %p189 = scmp.eq.s32.totalorder %s27, 1
      %p190 = por %p188, %p189
      %p191 = scmp.ne.s32.totalorder %s182, %s183
      %p192 = scmp.eq.s32.totalorder %s27, 0
      %p193 = por %p191, %p192
      %p194 = scmp.ne.s32.totalorder %s182, %s183
      %p195 = scmp.eq.s32.totalorder %s28, 1
      %p196 = por %p194, %p195
      %p198 = scmp.ne.s32.totalorder %s183, %s197
      %p199 = scmp.eq.s32.totalorder %s28, 0
      %p200 = por %p198, %p199
      %s202 = sadd.s32 %s201, 1
      %p205 = scmp.eq.s32.totalorder %s22, 1
      %p206 = scmp.ne.s32.totalorder %s201, %s203
      %p207 = scmp.eq.s32.totalorder %s22, 0
      %p208 = por %p206, %p207
      %p209 = scmp.ne.s32.totalorder %s201, %s203
      %p210 = scmp.eq.s32.totalorder %s27, 1
      %p211 = por %p209, %p210
      %p212 = scmp.ne.s32.totalorder %s203, %s204
      %p213 = scmp.eq.s32.totalorder %s27, 0
      %p214 = por %p212, %p213
      %p215 = scmp.ne.s32.totalorder %s203, %s204
      %p216 = scmp.eq.s32.totalorder %s28, 1
      %p217 = por %p215, %p216
      %p219 = scmp.ne.s32.totalorder %s204, %s218
      %p220 = scmp.eq.s32.totalorder %s28, 0
      %p221 = por %p219, %p220
      %s222 = ssub.s32 %s30, %s37
      %s223 = ssub.s32 %s29, %s41
      %s224 = sor.u32 %s222, %s223
      %p225 = scmp.eq.s32.totalorder %s224, 0
      %s227 = sadd.s32 %s226, 1
      %s228 = scalar_select %p225, %s226, %s227
      %p231 = pneg %p225
      %p232 = scmp.eq.s32.totalorder %s22, 1
      %p233 = por %p231, %p232
      %p234 = scmp.ne.s32.totalorder %s226, %s229
      %p235 = scmp.eq.s32.totalorder %s22, 0
      %p236 = por %p234, %p235
      %p237 = scmp.ne.s32.totalorder %s226, %s229
      %p238 = scmp.eq.s32.totalorder %s27, 1
      %p239 = por %p237, %p238
      %p240 = scmp.ne.s32.totalorder %s229, %s230
      %p241 = scmp.eq.s32.totalorder %s27, 0
      %p242 = por %p240, %p241
      %p243 = scmp.ne.s32.totalorder %s229, %s230
      %p244 = scmp.eq.s32.totalorder %s28, 1
      %p245 = por %p243, %p244
      %p247 = scmp.ne.s32.totalorder %s230, %s246
      %p248 = scmp.eq.s32.totalorder %s28, 0
      %p249 = por %p247, %p248
      %p250 = scmp.le.s32.totalorder 1, %s22
      %p251 = scmp.lt.s32.totalorder %s22, 3
      %p252 = pnand %p250, %p251
      %p253 = pneg %p252
      // Predicated region
      $region9: #{tpu_custom_call.1} parent=5 // pred_check
        _
      $region10: #{tpu_custom_call.1} parent=5 // pred_check_branch
        %255 = sbr.rel (%p252) target = $region12
      $region11: #{tpu_custom_call.1} parent=5 // pred_region
        %s256 = ssub.s32 %s22, 1
        // Predicated region
        $region13: #{tpu_custom_call.1} parent=11 // pred_check
          %p257 = pneg %p60
        $region14: #{tpu_custom_call.1} parent=11 // pred_check_branch
          %259 = sbr.rel (%p257) target = $region16
        $region15: #{tpu_custom_call.1} parent=11 // pred_region
          %p260 = scmp.lt.s32.totalorder %s31, 0
          %s261 = scalar_select %p260, %s31, 0
          %s262 = smul.addr %s261, 8
          %s263 = scalar_lea.vmem %s0, %s262
        $region16: #{tpu_custom_call.1} parent=11 // pred_fallthru
          _
        // Predicated region
        $region17: #{tpu_custom_call.1} parent=11 // pred_check
          %p264 = pneg %p109
        $region18: #{tpu_custom_call.1} parent=11 // pred_check_branch
          %266 = sbr.rel (%p264) target = $region20
        $region19: #{tpu_custom_call.1} parent=11 // pred_region
          _
        $region20: #{tpu_custom_call.1} parent=11 // pred_fallthru
          _
        // Predicated region
        $region21: #{tpu_custom_call.1} parent=11 // pred_check
          %p267 = pneg %p130
        $region22: #{tpu_custom_call.1} parent=11 // pred_check_branch
          %269 = sbr.rel (%p267) target = $region24
        $region23: #{tpu_custom_call.1} parent=11 // pred_region
          %s271 = ssub.s32 512, 512
          %272 = vsyncadd [#allocation8], %s271
          %s273 = sshll.u32 [#allocation7], 4
          %s274 = int_to_ptr.vmem [resolvable:$true] %s273
          %279 = dma.hbm_to_vmem [thread:$0]  %s3, 512, %s274, [#allocation8], 256, 256, 16
        $region24: #{tpu_custom_call.1} parent=11 // pred_fallthru
          _
        // Predicated region
        $region25: #{tpu_custom_call.1} parent=11 // pred_check
          %p280 = pneg %p151
        $region26: #{tpu_custom_call.1} parent=11 // pred_check_branch
          %282 = sbr.rel (%p280) target = $region28
        $region27: #{tpu_custom_call.1} parent=11 // pred_region
          %s284 = ssub.s32 4096, 4096
          %285 = vsyncadd [#allocation8], %s284
          %s286 = sshll.u32 [#allocation9], 4
          %s287 = int_to_ptr.vmem [resolvable:$true] %s286
          %292 = dma.hbm_to_vmem [thread:$0]  %s4, 4096, %s287, [#allocation8], 256, 256, 16
        $region28: #{tpu_custom_call.1} parent=11 // pred_fallthru
          _
        // Predicated region
        $region29: #{tpu_custom_call.1} parent=11 // pred_check
          %p293 = pneg %p172
        $region30: #{tpu_custom_call.1} parent=11 // pred_check_branch
          %295 = sbr.rel (%p293) target = $region32
        $region31: #{tpu_custom_call.1} parent=11 // pred_region
          _
        $region32: #{tpu_custom_call.1} parent=11 // pred_fallthru
          _
        // Predicated region
        $region33: #{tpu_custom_call.1} parent=11 // pred_check
          %p296 = pneg %p193
        $region34: #{tpu_custom_call.1} parent=11 // pred_check_branch
          %298 = sbr.rel (%p296) target = $region36
        $region35: #{tpu_custom_call.1} parent=11 // pred_region
          %s300 = ssub.s32 4096, 4096
          %301 = vsyncadd [#allocation11], %s300
          %s302 = sshll.u32 [#allocation10], 4
          %s303 = int_to_ptr.vmem [resolvable:$true] %s302
          %308 = dma.hbm_to_vmem [thread:$0]  %s6, 4096, %s303, [#allocation11], 128, 128, 8
        $region36: #{tpu_custom_call.1} parent=11 // pred_fallthru
          _
        // Predicated region
        $region37: #{tpu_custom_call.1} parent=11 // pred_check
          %p309 = pneg %p214
        $region38: #{tpu_custom_call.1} parent=11 // pred_check_branch
          %311 = sbr.rel (%p309) target = $region40
        $region39: #{tpu_custom_call.1} parent=11 // pred_region
          _
        $region40: #{tpu_custom_call.1} parent=11 // pred_fallthru
          _
      $region12: #{tpu_custom_call.1} parent=5 // pred_fallthru
        _
      %p312 = scmp.lt.s32.totalorder %s22, 2
      // Predicated region
      $region41: #{tpu_custom_call.1} parent=5 // pred_check
        %p313 = pneg %p312
      $region42: #{tpu_custom_call.1} parent=5 // pred_check_branch
        %315 = sbr.rel (%p313) target = $region44
      $region43: #{tpu_custom_call.1} parent=5 // pred_region
        // Predicated region
        $region45: #{tpu_custom_call.1} parent=43 // pred_check
          %p316 = pneg %p82
        $region46: #{tpu_custom_call.1} parent=43 // pred_check_branch
          %318 = sbr.rel (%p316) target = $region48
        $region47: #{tpu_custom_call.1} parent=43 // pred_region
          %s319 = sand.u32 %s72, 1
          %s320 = scalar_lea.sflag [#allocation5], %s319
          %s321 = sand.u32 %s72, 1
          %s322 = smul.addr %s321, 32
          %s323 = scalar_lea.vmem [#allocation4], %s322
          %s324 = smul.u32 4, %s30
          %s326 = ssub.s32 512, 512
          %327 = vsyncadd %s320, %s326
          %s328 = sadd.s32 %s29, %s324
          %s329 = smul.addr %s328, 128
          %s330 = scalar_lea.hbm %s1, %s329
          %s331 = sshll.u32 %s323, 4
          %s332 = int_to_ptr.vmem [resolvable:$true] %s331
          %337 = dma.hbm_to_vmem [thread:$0]  %s330, 512, %s332, %s320, 128, 128, 8
        $region48: #{tpu_custom_call.1} parent=43 // pred_fallthru
          _
      $region44: #{tpu_custom_call.1} parent=5 // pred_fallthru
        _
      %p338 = scmp.le.s32.totalorder 1, %s22
      %p339 = scmp.lt.s32.totalorder %s22, 3
      %p340 = pnand %p338, %p339
      %p341 = pneg %p340
      // Predicated region
      $region49: #{tpu_custom_call.1} parent=5 // pred_check
        _
      $region50: #{tpu_custom_call.1} parent=5 // pred_check_branch
        %343 = sbr.rel (%p340) target = $region52
      $region51: #{tpu_custom_call.1} parent=5 // pred_region
        %s344 = ssub.s32 %s22, 1
        %s345 = sand.u32 %s75, 1
        %s346 = scalar_lea.sflag [#allocation5], %s345
        %s347 = sand.u32 %s75, 1
        %s348 = smul.addr %s347, 32
        %s349 = scalar_lea.vmem [#allocation4], %s348
        // Predicated region
        $region53: #{tpu_custom_call.1} parent=51 // pred_check
          %p350 = pneg %p88
        $region54: #{tpu_custom_call.1} parent=51 // pred_check_branch
          %352 = sbr.rel (%p350) target = $region56
        $region55: #{tpu_custom_call.1} parent=51 // pred_region
          %353 = dma.done %s346, 512
        $region56: #{tpu_custom_call.1} parent=51 // pred_fallthru
          _
        // Predicated region
        $region57: #{tpu_custom_call.1} parent=51 // pred_check
          %p354 = pneg %p130
        $region58: #{tpu_custom_call.1} parent=51 // pred_check_branch
          %356 = sbr.rel (%p354) target = $region60
        $region59: #{tpu_custom_call.1} parent=51 // pred_region
          %357 = dma.done [#allocation8], 512
        $region60: #{tpu_custom_call.1} parent=51 // pred_fallthru
          _
        // Predicated region
        $region61: #{tpu_custom_call.1} parent=51 // pred_check
          %p358 = pneg %p151
        $region62: #{tpu_custom_call.1} parent=51 // pred_check_branch
          %360 = sbr.rel (%p358) target = $region64
        $region63: #{tpu_custom_call.1} parent=51 // pred_region
          %361 = dma.done [#allocation8], 4096
        $region64: #{tpu_custom_call.1} parent=51 // pred_fallthru
          _
        // Predicated region
        $region65: #{tpu_custom_call.1} parent=51 // pred_check
          %p362 = pneg %p193
        $region66: #{tpu_custom_call.1} parent=51 // pred_check_branch
          %364 = sbr.rel (%p362) target = $region68
        $region67: #{tpu_custom_call.1} parent=51 // pred_region
          %365 = dma.done [#allocation11], 4096
        $region68: #{tpu_custom_call.1} parent=51 // pred_fallthru
          _
        %p366 = scmp.lt.s32.totalorder %s31, 0
        %s367 = scalar_select %p366, %s31, 0
        %s368 = smul.addr %s367, 8
        %s369 = scalar_lea.vmem %s0, %s368
        %p370 = pneg %p60
        %p371 = pneg %p57
        %s372 = sand.u32 %s75, 1
        %s373 = scalar_lea.sflag [#allocation5], %s372
        %s374 = sand.u32 %s75, 1
        %s375 = smul.addr %s374, 32
        %s376 = scalar_lea.vmem [#allocation4], %s375
        %p377 = pneg %p88
        %p378 = pneg %p85
        %p379 = pneg %p109
        %p380 = pneg %p106
        %p381 = pneg %p130
        %p382 = pneg %p127
        %p383 = pneg %p151
        %p384 = pneg %p148
        %p385 = pneg %p172
        %p386 = pneg %p169
        %p387 = pneg %p193
        %p388 = pneg %p190
        %p389 = pneg %p214
        %p390 = pneg %p211
        %p391 = pneg %p242
        %p392 = pneg %p239
        %s393 = sand.u32 %s229, 1
        %s394 = scalar_lea.sflag [#allocation6], %s393
        %s395 = sand.u32 %s229, 1
        %s396 = smul.addr %s395, 32
        %s397 = scalar_lea.vmem [#allocation12], %s396
        %p398 = scmp.lt.s32.totalorder %s31, 0
        %s399 = scalar_select %p398, %s31, 0
        %s400 = smul.addr %s399, 8
        %s401 = scalar_lea.vmem %s0, %s400
        %s402 = smul.u32 4, %s32
        %s403 = smul.u32 4, %s32
        %p404 = scmp.eq.s32.totalorder %s32, 0
        // Predicated region
        $region69: #{tpu_custom_call.1} parent=51 // pred_check
          %p405 = pneg %p404
        $region70: #{tpu_custom_call.1} parent=51 // pred_check_branch
          %407 = sbr.rel (%p405) target = $region72
        $region71: #{tpu_custom_call.1} parent=51 // pred_region
          %408 = vst [vmem:[#allocation3] sm:$0xff] 0.0
        $region72: #{tpu_custom_call.1} parent=51 // pred_fallthru
          _
        %v409 = vld [vmem:[%s401] sm:$0xff]
        %v410 = vld [vmem:[%s2] sm:$0xff]
        %v411 = vld [vmem:[%s5] sm:$0x3]
        %v413 = vlaneseq
        %v414 = vshrl.u32 %v413, 7
        %v415 = vsub.s32 0, %v414
        %v416 = vrot.slane %v411, %v415
        %v417 = vlaneseq
        %v418 = vshrl.u32 %v417, 7
        %v419 = vsub.s32 1, %v418
        %v420 = vrot.slane %v411, %v419
        %v424 = vcombine.high %v410, %v410
        %vm425 = vcmask 31744
        %v427 = vsel %vm425, %v409, 0
        %vm429 = vcmask 1043456
        %v430 = vsel %vm429, %v410, 0
        %v432 = vsel %vm429, %v424, 0
        %434 = vmatprep.subr.mxu0 %v432
        %435 = vmatpush1.msra.mxu0 %v430
        %436 = vmatprep.subr.mxu0 0.0
        %437 = vmatpush1.msra.mxu0 0.0
        %438 = vmatprep.subr.mxu0 0.0
        %439 = vmatpush1.msra.mxu0 0.0
        %440 = vmatprep.subr.mxu0 0.0
        %441 = vmatpush1.msra.mxu0 0.0
        %442 = vmatprep.subr.mxu0 0.0
        %443 = vmatpush1.msra.mxu0 0.0
        %444 = vmatprep.subr.mxu0 0.0
        %445 = vmatpush1.msra.mxu0 0.0
        %446 = vmatprep.subr.mxu0 0.0
        %447 = vmatpush1.msra.mxu0 0.0
        %448 = vmatprep.subr.mxu0 0.0
        %449 = vmatpush1.msra.mxu0 0.0
        %450 = vmatprep.subr.mxu0 0.0
        %451 = vmatpush1.msra.mxu0 0.0
        %452 = vmatprep.subr.mxu0 0.0
        %453 = vmatpush1.msra.mxu0 0.0
        %454 = vmatprep.subr.mxu0 0.0
        %455 = vmatpush1.msra.mxu0 0.0
        %456 = vmatprep.subr.mxu0 0.0
        %457 = vmatpush1.msra.mxu0 0.0
        %458 = vmatprep.subr.mxu0 0.0
        %459 = vmatpush1.msra.mxu0 0.0
        %460 = vmatprep.subr.mxu0 0.0
        %461 = vmatpush1.msra.mxu0 0.0
        %462 = vmatprep.subr.mxu0 0.0
        %463 = vmatpush1.msra.mxu0 0.0
        %464 = vmatprep.subr.mxu0 0.0
        %465 = vmatpush1.msra.mxu0 0.0
        %466 = vmatprep.subr.mxu0 0.0
        %467 = vmatpush1.msra.mxu0 0.0
        %468 = vmatprep.subr.mxu0 0.0
        %469 = vmatpush1.msra.mxu0 0.0
        %470 = vmatprep.subr.mxu0 0.0
        %471 = vmatpush1.msra.mxu0 0.0
        %472 = vmatprep.subr.mxu0 0.0
        %473 = vmatpush1.msra.mxu0 0.0
        %474 = vmatprep.subr.mxu0 0.0
        %475 = vmatpush1.msra.mxu0 0.0
        %476 = vmatprep.subr.mxu0 0.0
        %477 = vmatpush1.msra.mxu0 0.0
        %478 = vmatprep.subr.mxu0 0.0
        %479 = vmatpush1.msra.mxu0 0.0
        %480 = vmatprep.subr.mxu0 0.0
        %481 = vmatpush1.msra.mxu0 0.0
        %482 = vmatprep.subr.mxu0 0.0
        %483 = vmatpush1.msra.mxu0 0.0
        %484 = vmatprep.subr.mxu0 0.0
        %485 = vmatpush1.msra.mxu0 0.0
        %486 = vmatprep.subr.mxu0 0.0
        %487 = vmatpush1.msra.mxu0 0.0
        %488 = vmatprep.subr.mxu0 0.0
        %489 = vmatpush1.msra.mxu0 0.0
        %490 = vmatprep.subr.mxu0 0.0
        %491 = vmatpush1.msra.mxu0 0.0
        %492 = vmatprep.subr.mxu0 0.0
        %493 = vmatpush1.msra.mxu0 0.0
        %494 = vmatprep.subr.mxu0 0.0
        %495 = vmatpush1.msra.mxu0 0.0
        %496 = vmatprep.subr.mxu0 0.0
        %497 = vmatpush1.msra.mxu0 0.0
        %498 = vmatprep.mubr.f32.mxu0 0.0
        %499 = vmatmul.mubr.f32.gmra.mrb[0].mxu0 %v427
        %v500 = vpop.f32.mrb[0].mxu0
        %v501 = vadd.f32 %v416, %v500
        %v502 = vpop.f32.mrb[0].mxu0
        %v503 = vadd.f32 %v420, %v502
        %504 = vdwg.mxu0
        %v505 = vld [vmem:[%s349] sm:$0xff]
        %v506 = vld [vmem:[%s349 + $0x8] sm:$0xff]
        %v507 = vld [vmem:[%s349 + $0x10] sm:$0xff]
        %v508 = vld [vmem:[%s349 + $0x18] sm:$0xff]
        %v509 = vld [vmem:[#allocation7] sm:$0xff]
        %v510 = vld [vmem:[#allocation7 + $0x8] sm:$0xff]
        %v511 = vld [vmem:[#allocation7 + $0x10] sm:$0xff]
        %v512 = vld [vmem:[#allocation7 + $0x18] sm:$0xff]
        %vm513 = vcmask 130048
        %v515 = vsel %vm513, %v505, 0
        %v518 = vsel %vm513, %v506, 0
        %v521 = vsel %vm513, %v507, 0
        %v524 = vsel %vm513, %v508, 0
        %526 = vmatprep.subr.mxu0 %v510
        %527 = vmatpush1.msra.mxu0 %v509
        %528 = vmatprep.subr.mxu0 %v512
        %529 = vmatpush1.msra.mxu0 %v511
        %530 = vmatprep.subr.mxu0 0.0
        %531 = vmatpush1.msra.mxu0 0.0
        %532 = vmatprep.subr.mxu0 0.0
        %533 = vmatpush1.msra.mxu0 0.0
        %534 = vmatprep.subr.mxu0 0.0
        %535 = vmatpush1.msra.mxu0 0.0
        %536 = vmatprep.subr.mxu0 0.0
        %537 = vmatpush1.msra.mxu0 0.0
        %538 = vmatprep.subr.mxu0 0.0
        %539 = vmatpush1.msra.mxu0 0.0
        %540 = vmatprep.subr.mxu0 0.0
        %541 = vmatpush1.msra.mxu0 0.0
        %542 = vmatprep.subr.mxu0 0.0
        %543 = vmatpush1.msra.mxu0 0.0
        %544 = vmatprep.subr.mxu0 0.0
        %545 = vmatpush1.msra.mxu0 0.0
        %546 = vmatprep.subr.mxu0 0.0
        %547 = vmatpush1.msra.mxu0 0.0
        %548 = vmatprep.subr.mxu0 0.0
        %549 = vmatpush1.msra.mxu0 0.0
        %550 = vmatprep.subr.mxu0 0.0
        %551 = vmatpush1.msra.mxu0 0.0
        %552 = vmatprep.subr.mxu0 0.0
        %553 = vmatpush1.msra.mxu0 0.0
        %554 = vmatprep.subr.mxu0 0.0
        %555 = vmatpush1.msra.mxu0 0.0
        %556 = vmatprep.subr.mxu0 0.0
        %557 = vmatpush1.msra.mxu0 0.0
        %558 = vmatprep.subr.mxu0 0.0
        %559 = vmatpush1.msra.mxu0 0.0
        %560 = vmatprep.subr.mxu0 0.0
        %561 = vmatpush1.msra.mxu0 0.0
        %562 = vmatprep.subr.mxu0 0.0
        %563 = vmatpush1.msra.mxu0 0.0
        %564 = vmatprep.subr.mxu0 0.0
        %565 = vmatpush1.msra.mxu0 0.0
        %566 = vmatprep.subr.mxu0 0.0
        %567 = vmatpush1.msra.mxu0 0.0
        %568 = vmatprep.subr.mxu0 0.0
        %569 = vmatpush1.msra.mxu0 0.0
        %570 = vmatprep.subr.mxu0 0.0
        %571 = vmatpush1.msra.mxu0 0.0
        %572 = vmatprep.subr.mxu0 0.0
        %573 = vmatpush1.msra.mxu0 0.0
        %574 = vmatprep.subr.mxu0 0.0
        %575 = vmatpush1.msra.mxu0 0.0
        %576 = vmatprep.subr.mxu0 0.0
        %577 = vmatpush1.msra.mxu0 0.0
        %578 = vmatprep.subr.mxu0 0.0
        %579 = vmatpush1.msra.mxu0 0.0
        %580 = vmatprep.subr.mxu0 0.0
        %581 = vmatpush1.msra.mxu0 0.0
        %582 = vmatprep.subr.mxu0 0.0
        %583 = vmatpush1.msra.mxu0 0.0
        %584 = vmatprep.subr.mxu0 0.0
        %585 = vmatpush1.msra.mxu0 0.0
        %586 = vmatprep.subr.mxu0 0.0
        %587 = vmatpush1.msra.mxu0 0.0
        %588 = vmatprep.subr.mxu0 0.0
        %589 = vmatpush1.msra.mxu0 0.0
        %590 = vmatprep.mubr.f32.mxu0 0.0
        %591 = vmatmul.mubr.f32.gmra.mrb[0].mxu0 %v515
        %v592 = vpop.f32.mrb[0].mxu0
        %v593 = vadd.f32 0.0, %v592
        %v594 = vpop.f32.mrb[0].mxu0
        %v595 = vadd.f32 0.0, %v594
        %596 = vmatprep.mubr.f32.mxu0 0.0
        %597 = vmatmul.mubr.f32.gmra.mrb[0].mxu0 %v518
        %v598 = vpop.f32.mrb[0].mxu0
        %v599 = vadd.f32 0.0, %v598
        %v600 = vpop.f32.mrb[0].mxu0
        %v601 = vadd.f32 0.0, %v600
        %602 = vmatprep.mubr.f32.mxu0 0.0
        %603 = vmatmul.mubr.f32.gmra.mrb[0].mxu0 %v521
        %v604 = vpop.f32.mrb[0].mxu0
        %v605 = vadd.f32 0.0, %v604
        %v606 = vpop.f32.mrb[0].mxu0
        %v607 = vadd.f32 0.0, %v606
        %608 = vmatprep.mubr.f32.mxu0 0.0
        %609 = vmatmul.mubr.f32.gmra.mrb[0].mxu0 %v524
        %v610 = vpop.f32.mrb[0].mxu0
        %v611 = vadd.f32 0.0, %v610
        %v612 = vpop.f32.mrb[0].mxu0
        %v613 = vadd.f32 0.0, %v612
        %614 = vdwg.mxu0
        %v615 = vadd.f32 %v593, %v501
        %v616 = vadd.f32 %v595, %v503
        %v617 = vadd.f32 %v599, %v501
        %v618 = vadd.f32 %v601, %v503
        %v619 = vadd.f32 %v605, %v501
        %v620 = vadd.f32 %v607, %v503
        %v621 = vadd.f32 %v611, %v501
        %v622 = vadd.f32 %v613, %v503
        %623 = vst [vmem:[#allocation2] sm:$0xff] %v615
        %624 = vst [vmem:[#allocation2 + $0x8] sm:$0xff] %v616
        %625 = vst [vmem:[#allocation2 + $0x10] sm:$0xff] %v617
        %626 = vst [vmem:[#allocation2 + $0x18] sm:$0xff] %v618
        %627 = vst [vmem:[#allocation2 + $0x20] sm:$0xff] %v619
        %628 = vst [vmem:[#allocation2 + $0x28] sm:$0xff] %v620
        %629 = vst [vmem:[#allocation2 + $0x30] sm:$0xff] %v621
        %630 = vst [vmem:[#allocation2 + $0x38] sm:$0xff] %v622
        %v631 = vld [vmem:[#allocation9] sm:$0xff]
        %v632 = vld [vmem:[#allocation9 + $0x8] sm:$0xff]
        %v633 = vld [vmem:[#allocation9 + $0x10] sm:$0xff]
        %v634 = vld [vmem:[#allocation9 + $0x18] sm:$0xff]
        %v635 = vld [vmem:[#allocation9 + $0x20] sm:$0xff]
        %v636 = vld [vmem:[#allocation9 + $0x28] sm:$0xff]
        %v637 = vld [vmem:[#allocation9 + $0x30] sm:$0xff]
        %v638 = vld [vmem:[#allocation9 + $0x38] sm:$0xff]
        %v639 = vld [vmem:[#allocation9 + $0x40] sm:$0xff]
        %v640 = vld [vmem:[#allocation9 + $0x48] sm:$0xff]
        %v641 = vld [vmem:[#allocation9 + $0x50] sm:$0xff]
        %v642 = vld [vmem:[#allocation9 + $0x58] sm:$0xff]
        %v643 = vld [vmem:[#allocation9 + $0x60] sm:$0xff]
        %v644 = vld [vmem:[#allocation9 + $0x68] sm:$0xff]
        %v645 = vld [vmem:[#allocation9 + $0x70] sm:$0xff]
        %v646 = vld [vmem:[#allocation9 + $0x78] sm:$0xff]
        %v647 = vld [vmem:[#allocation9 + $0x80] sm:$0xff]
        %v648 = vld [vmem:[#allocation9 + $0x88] sm:$0xff]
        %v649 = vld [vmem:[#allocation9 + $0x90] sm:$0xff]
        %v650 = vld [vmem:[#allocation9 + $0x98] sm:$0xff]
        %v651 = vld [vmem:[#allocation9 + $0xa0] sm:$0xff]
        %v652 = vld [vmem:[#allocation9 + $0xa8] sm:$0xff]
        %v653 = vld [vmem:[#allocation9 + $0xb0] sm:$0xff]
        %v654 = vld [vmem:[#allocation9 + $0xb8] sm:$0xff]
        %v655 = vld [vmem:[#allocation9 + $0xc0] sm:$0xff]
        %v656 = vld [vmem:[#allocation9 + $0xc8] sm:$0xff]
        %v657 = vld [vmem:[#allocation9 + $0xd0] sm:$0xff]
        %v658 = vld [vmem:[#allocation9 + $0xd8] sm:$0xff]
        %v659 = vld [vmem:[#allocation9 + $0xe0] sm:$0xff]
        %v660 = vld [vmem:[#allocation9 + $0xe8] sm:$0xff]
        %v661 = vld [vmem:[#allocation9 + $0xf0] sm:$0xff]
        %v662 = vld [vmem:[#allocation9 + $0xf8] sm:$0xff]
        %v663 = vld [vmem:[#allocation3] sm:$0xff]
        %v664 = vld [vmem:[#allocation2] sm:$0xff]
        %v665 = vld [vmem:[#allocation2 + $0x8] sm:$0xff]
        %666 = vmatprep.subr.mxu0 %v632
        %667 = vmatpush1.msra.mxu0 %v631
        %668 = vmatprep.subr.mxu0 %v634
        %669 = vmatpush1.msra.mxu0 %v633
        %670 = vmatprep.subr.mxu0 %v636
        %671 = vmatpush1.msra.mxu0 %v635
        %672 = vmatprep.subr.mxu0 %v638
        %673 = vmatpush1.msra.mxu0 %v637
        %674 = vmatprep.subr.mxu0 %v640
        %675 = vmatpush1.msra.mxu0 %v639
        %676 = vmatprep.subr.mxu0 %v642
        %677 = vmatpush1.msra.mxu0 %v641
        %678 = vmatprep.subr.mxu0 %v644
        %679 = vmatpush1.msra.mxu0 %v643
        %680 = vmatprep.subr.mxu0 %v646
        %681 = vmatpush1.msra.mxu0 %v645
        %682 = vmatprep.subr.mxu0 %v648
        %683 = vmatpush1.msra.mxu0 %v647
        %684 = vmatprep.subr.mxu0 %v650
        %685 = vmatpush1.msra.mxu0 %v649
        %686 = vmatprep.subr.mxu0 %v652
        %687 = vmatpush1.msra.mxu0 %v651
        %688 = vmatprep.subr.mxu0 %v654
        %689 = vmatpush1.msra.mxu0 %v653
        %690 = vmatprep.subr.mxu0 %v656
        %691 = vmatpush1.msra.mxu0 %v655
        %692 = vmatprep.subr.mxu0 %v658
        %693 = vmatpush1.msra.mxu0 %v657
        %694 = vmatprep.subr.mxu0 %v660
        %695 = vmatpush1.msra.mxu0 %v659
        %696 = vmatprep.subr.mxu0 %v662
        %697 = vmatpush1.msra.mxu0 %v661
        %698 = vmatprep.subr.mxu0 0.0
        %699 = vmatpush1.msra.mxu0 0.0
        %700 = vmatprep.subr.mxu0 0.0
        %701 = vmatpush1.msra.mxu0 0.0
        %702 = vmatprep.subr.mxu0 0.0
        %703 = vmatpush1.msra.mxu0 0.0
        %704 = vmatprep.subr.mxu0 0.0
        %705 = vmatpush1.msra.mxu0 0.0
        %706 = vmatprep.subr.mxu0 0.0
        %707 = vmatpush1.msra.mxu0 0.0
        %708 = vmatprep.subr.mxu0 0.0
        %709 = vmatpush1.msra.mxu0 0.0
        %710 = vmatprep.subr.mxu0 0.0
        %711 = vmatpush1.msra.mxu0 0.0
        %712 = vmatprep.subr.mxu0 0.0
        %713 = vmatpush1.msra.mxu0 0.0
        %714 = vmatprep.subr.mxu0 0.0
        %715 = vmatpush1.msra.mxu0 0.0
        %716 = vmatprep.subr.mxu0 0.0
        %717 = vmatpush1.msra.mxu0 0.0
        %718 = vmatprep.subr.mxu0 0.0
        %719 = vmatpush1.msra.mxu0 0.0
        %720 = vmatprep.subr.mxu0 0.0
        %721 = vmatpush1.msra.mxu0 0.0
        %722 = vmatprep.subr.mxu0 0.0
        %723 = vmatpush1.msra.mxu0 0.0
        %724 = vmatprep.subr.mxu0 0.0
        %725 = vmatpush1.msra.mxu0 0.0
        %726 = vmatprep.subr.mxu0 0.0
        %727 = vmatpush1.msra.mxu0 0.0
        %728 = vmatprep.subr.mxu0 0.0
        %729 = vmatpush1.msra.mxu0 0.0
        %730 = vmatprep.mubr.f32.mxu0 0.0
        %731 = vmatmul.mubr.f32.gmra.mrb[0].mxu0 %v663
        %v732 = vpop.f32.mrb[0].mxu0
        %v733 = vadd.f32 0.0, %v732
        %v734 = vpop.f32.mrb[0].mxu0
        %v735 = vadd.f32 0.0, %v734
        %736 = vdwg.mxu0
        %v737 = vadd.f32 %v664, %v733
        %v738 = vadd.f32 %v665, %v735
        %739 = vst [vmem:[#allocation2] sm:$0xff] %v737
        %740 = vst [vmem:[#allocation2 + $0x8] sm:$0xff] %v738
        %s741 = scalar_lea.vmem [#allocation2], 16
        %v742 = vld [vmem:[%s741] sm:$0xff]
        %v743 = vld [vmem:[%s741 + $0x8] sm:$0xff]
        %744 = vmatprep.subr.mxu0 %v632
        %745 = vmatpush1.msra.mxu0 %v631
        %746 = vmatprep.subr.mxu0 %v634
        %747 = vmatpush1.msra.mxu0 %v633
        %748 = vmatprep.subr.mxu0 %v636
        %749 = vmatpush1.msra.mxu0 %v635
        %750 = vmatprep.subr.mxu0 %v638
        %751 = vmatpush1.msra.mxu0 %v637
        %752 = vmatprep.subr.mxu0 %v640
        %753 = vmatpush1.msra.mxu0 %v639
        %754 = vmatprep.subr.mxu0 %v642
        %755 = vmatpush1.msra.mxu0 %v641
        %756 = vmatprep.subr.mxu0 %v644
        %757 = vmatpush1.msra.mxu0 %v643
        %758 = vmatprep.subr.mxu0 %v646
        %759 = vmatpush1.msra.mxu0 %v645
        %760 = vmatprep.subr.mxu0 %v648
        %761 = vmatpush1.msra.mxu0 %v647
        %762 = vmatprep.subr.mxu0 %v650
        %763 = vmatpush1.msra.mxu0 %v649
        %764 = vmatprep.subr.mxu0 %v652
        %765 = vmatpush1.msra.mxu0 %v651
        %766 = vmatprep.subr.mxu0 %v654
        %767 = vmatpush1.msra.mxu0 %v653
        %768 = vmatprep.subr.mxu0 %v656
        %769 = vmatpush1.msra.mxu0 %v655
        %770 = vmatprep.subr.mxu0 %v658
        %771 = vmatpush1.msra.mxu0 %v657
        %772 = vmatprep.subr.mxu0 %v660
        %773 = vmatpush1.msra.mxu0 %v659
        %774 = vmatprep.subr.mxu0 %v662
        %775 = vmatpush1.msra.mxu0 %v661
        %776 = vmatprep.subr.mxu0 0.0
        %777 = vmatpush1.msra.mxu0 0.0
        %778 = vmatprep.subr.mxu0 0.0
        %779 = vmatpush1.msra.mxu0 0.0
        %780 = vmatprep.subr.mxu0 0.0
        %781 = vmatpush1.msra.mxu0 0.0
        %782 = vmatprep.subr.mxu0 0.0
        %783 = vmatpush1.msra.mxu0 0.0
        %784 = vmatprep.subr.mxu0 0.0
        %785 = vmatpush1.msra.mxu0 0.0
        %786 = vmatprep.subr.mxu0 0.0
        %787 = vmatpush1.msra.mxu0 0.0
        %788 = vmatprep.subr.mxu0 0.0
        %789 = vmatpush1.msra.mxu0 0.0
        %790 = vmatprep.subr.mxu0 0.0
        %791 = vmatpush1.msra.mxu0 0.0
        %792 = vmatprep.subr.mxu0 0.0
        %793 = vmatpush1.msra.mxu0 0.0
        %794 = vmatprep.subr.mxu0 0.0
        %795 = vmatpush1.msra.mxu0 0.0
        %796 = vmatprep.subr.mxu0 0.0
        %797 = vmatpush1.msra.mxu0 0.0
        %798 = vmatprep.subr.mxu0 0.0
        %799 = vmatpush1.msra.mxu0 0.0
        %800 = vmatprep.subr.mxu0 0.0
        %801 = vmatpush1.msra.mxu0 0.0
        %802 = vmatprep.subr.mxu0 0.0
        %803 = vmatpush1.msra.mxu0 0.0
        %804 = vmatprep.subr.mxu0 0.0
        %805 = vmatpush1.msra.mxu0 0.0
        %806 = vmatprep.subr.mxu0 0.0
        %807 = vmatpush1.msra.mxu0 0.0
        %808 = vmatprep.mubr.f32.mxu0 0.0
        %809 = vmatmul.mubr.f32.gmra.mrb[0].mxu0 %v737
        %v810 = vpop.f32.mrb[0].mxu0
        %v811 = vadd.f32 0.0, %v810
        %v812 = vpop.f32.mrb[0].mxu0
        %v813 = vadd.f32 0.0, %v812
        %814 = vdwg.mxu0
        %v815 = vadd.f32 %v742, %v811
        %v816 = vadd.f32 %v743, %v813
        %817 = vst [vmem:[%s741] sm:$0xff] %v815
        %818 = vst [vmem:[%s741 + $0x8] sm:$0xff] %v816
        %s819 = scalar_lea.vmem [#allocation2], 32
        %v820 = vld [vmem:[%s819] sm:$0xff]
        %v821 = vld [vmem:[%s819 + $0x8] sm:$0xff]
        %822 = vmatprep.subr.mxu0 %v632
        %823 = vmatpush1.msra.mxu0 %v631
        %824 = vmatprep.subr.mxu0 %v634
        %825 = vmatpush1.msra.mxu0 %v633
        %826 = vmatprep.subr.mxu0 %v636
        %827 = vmatpush1.msra.mxu0 %v635
        %828 = vmatprep.subr.mxu0 %v638
        %829 = vmatpush1.msra.mxu0 %v637
        %830 = vmatprep.subr.mxu0 %v640
        %831 = vmatpush1.msra.mxu0 %v639
        %832 = vmatprep.subr.mxu0 %v642
        %833 = vmatpush1.msra.mxu0 %v641
        %834 = vmatprep.subr.mxu0 %v644
        %835 = vmatpush1.msra.mxu0 %v643
        %836 = vmatprep.subr.mxu0 %v646
        %837 = vmatpush1.msra.mxu0 %v645
        %838 = vmatprep.subr.mxu0 %v648
        %839 = vmatpush1.msra.mxu0 %v647
        %840 = vmatprep.subr.mxu0 %v650
        %841 = vmatpush1.msra.mxu0 %v649
        %842 = vmatprep.subr.mxu0 %v652
        %843 = vmatpush1.msra.mxu0 %v651
        %844 = vmatprep.subr.mxu0 %v654
        %845 = vmatpush1.msra.mxu0 %v653
        %846 = vmatprep.subr.mxu0 %v656
        %847 = vmatpush1.msra.mxu0 %v655
        %848 = vmatprep.subr.mxu0 %v658
        %849 = vmatpush1.msra.mxu0 %v657
        %850 = vmatprep.subr.mxu0 %v660
        %851 = vmatpush1.msra.mxu0 %v659
        %852 = vmatprep.subr.mxu0 %v662
        %853 = vmatpush1.msra.mxu0 %v661
        %854 = vmatprep.subr.mxu0 0.0
        %855 = vmatpush1.msra.mxu0 0.0
        %856 = vmatprep.subr.mxu0 0.0
        %857 = vmatpush1.msra.mxu0 0.0
        %858 = vmatprep.subr.mxu0 0.0
        %859 = vmatpush1.msra.mxu0 0.0
        %860 = vmatprep.subr.mxu0 0.0
        %861 = vmatpush1.msra.mxu0 0.0
        %862 = vmatprep.subr.mxu0 0.0
        %863 = vmatpush1.msra.mxu0 0.0
        %864 = vmatprep.subr.mxu0 0.0
        %865 = vmatpush1.msra.mxu0 0.0
        %866 = vmatprep.subr.mxu0 0.0
        %867 = vmatpush1.msra.mxu0 0.0
        %868 = vmatprep.subr.mxu0 0.0
        %869 = vmatpush1.msra.mxu0 0.0
        %870 = vmatprep.subr.mxu0 0.0
        %871 = vmatpush1.msra.mxu0 0.0
        %872 = vmatprep.subr.mxu0 0.0
        %873 = vmatpush1.msra.mxu0 0.0
        %874 = vmatprep.subr.mxu0 0.0
        %875 = vmatpush1.msra.mxu0 0.0
        %876 = vmatprep.subr.mxu0 0.0
        %877 = vmatpush1.msra.mxu0 0.0
        %878 = vmatprep.subr.mxu0 0.0
        %879 = vmatpush1.msra.mxu0 0.0
        %880 = vmatprep.subr.mxu0 0.0
        %881 = vmatpush1.msra.mxu0 0.0
        %882 = vmatprep.subr.mxu0 0.0
        %883 = vmatpush1.msra.mxu0 0.0
        %884 = vmatprep.subr.mxu0 0.0
        %885 = vmatpush1.msra.mxu0 0.0
        %886 = vmatprep.mubr.f32.mxu0 0.0
        %887 = vmatmul.mubr.f32.gmra.mrb[0].mxu0 %v815
        %v888 = vpop.f32.mrb[0].mxu0
        %v889 = vadd.f32 0.0, %v888
        %v890 = vpop.f32.mrb[0].mxu0
        %v891 = vadd.f32 0.0, %v890
        %892 = vdwg.mxu0
        %v893 = vadd.f32 %v820, %v889
        %v894 = vadd.f32 %v821, %v891
        %895 = vst [vmem:[%s819] sm:$0xff] %v893
        %896 = vst [vmem:[%s819 + $0x8] sm:$0xff] %v894
        %s897 = scalar_lea.vmem [#allocation2], 48
        %v898 = vld [vmem:[%s897] sm:$0xff]
        %v899 = vld [vmem:[%s897 + $0x8] sm:$0xff]
        %900 = vmatprep.subr.mxu0 %v632
        %901 = vmatpush1.msra.mxu0 %v631
        %902 = vmatprep.subr.mxu0 %v634
        %903 = vmatpush1.msra.mxu0 %v633
        %904 = vmatprep.subr.mxu0 %v636
        %905 = vmatpush1.msra.mxu0 %v635
        %906 = vmatprep.subr.mxu0 %v638
        %907 = vmatpush1.msra.mxu0 %v637
        %908 = vmatprep.subr.mxu0 %v640
        %909 = vmatpush1.msra.mxu0 %v639
        %910 = vmatprep.subr.mxu0 %v642
        %911 = vmatpush1.msra.mxu0 %v641
        %912 = vmatprep.subr.mxu0 %v644
        %913 = vmatpush1.msra.mxu0 %v643
        %914 = vmatprep.subr.mxu0 %v646
        %915 = vmatpush1.msra.mxu0 %v645
        %916 = vmatprep.subr.mxu0 %v648
        %917 = vmatpush1.msra.mxu0 %v647
        %918 = vmatprep.subr.mxu0 %v650
        %919 = vmatpush1.msra.mxu0 %v649
        %920 = vmatprep.subr.mxu0 %v652
        %921 = vmatpush1.msra.mxu0 %v651
        %922 = vmatprep.subr.mxu0 %v654
        %923 = vmatpush1.msra.mxu0 %v653
        %924 = vmatprep.subr.mxu0 %v656
        %925 = vmatpush1.msra.mxu0 %v655
        %926 = vmatprep.subr.mxu0 %v658
        %927 = vmatpush1.msra.mxu0 %v657
        %928 = vmatprep.subr.mxu0 %v660
        %929 = vmatpush1.msra.mxu0 %v659
        %930 = vmatprep.subr.mxu0 %v662
        %931 = vmatpush1.msra.mxu0 %v661
        %932 = vmatprep.subr.mxu0 0.0
        %933 = vmatpush1.msra.mxu0 0.0
        %934 = vmatprep.subr.mxu0 0.0
        %935 = vmatpush1.msra.mxu0 0.0
        %936 = vmatprep.subr.mxu0 0.0
        %937 = vmatpush1.msra.mxu0 0.0
        %938 = vmatprep.subr.mxu0 0.0
        %939 = vmatpush1.msra.mxu0 0.0
        %940 = vmatprep.subr.mxu0 0.0
        %941 = vmatpush1.msra.mxu0 0.0
        %942 = vmatprep.subr.mxu0 0.0
        %943 = vmatpush1.msra.mxu0 0.0
        %944 = vmatprep.subr.mxu0 0.0
        %945 = vmatpush1.msra.mxu0 0.0
        %946 = vmatprep.subr.mxu0 0.0
        %947 = vmatpush1.msra.mxu0 0.0
        %948 = vmatprep.subr.mxu0 0.0
        %949 = vmatpush1.msra.mxu0 0.0
        %950 = vmatprep.subr.mxu0 0.0
        %951 = vmatpush1.msra.mxu0 0.0
        %952 = vmatprep.subr.mxu0 0.0
        %953 = vmatpush1.msra.mxu0 0.0
        %954 = vmatprep.subr.mxu0 0.0
        %955 = vmatpush1.msra.mxu0 0.0
        %956 = vmatprep.subr.mxu0 0.0
        %957 = vmatpush1.msra.mxu0 0.0
        %958 = vmatprep.subr.mxu0 0.0
        %959 = vmatpush1.msra.mxu0 0.0
        %960 = vmatprep.subr.mxu0 0.0
        %961 = vmatpush1.msra.mxu0 0.0
        %962 = vmatprep.subr.mxu0 0.0
        %963 = vmatpush1.msra.mxu0 0.0
        %964 = vmatprep.mubr.f32.mxu0 0.0
        %965 = vmatmul.mubr.f32.gmra.mrb[0].mxu0 %v893
        %v966 = vpop.f32.mrb[0].mxu0
        %v967 = vadd.f32 0.0, %v966
        %v968 = vpop.f32.mrb[0].mxu0
        %v969 = vadd.f32 0.0, %v968
        %970 = vdwg.mxu0
        %v971 = vadd.f32 %v898, %v967
        %v972 = vadd.f32 %v899, %v969
        %973 = vst [vmem:[%s897] sm:$0xff] %v971
        %974 = vst [vmem:[%s897 + $0x8] sm:$0xff] %v972
        %975 = vst [vmem:[#allocation3] sm:$0xff] %v971
        %v976 = vld [vmem:[#allocation2] sm:$0xff]
        %v977 = vld [vmem:[#allocation2 + $0x8] sm:$0xff]
        %v978 = vld [vmem:[#allocation2 + $0x10] sm:$0xff]
        %v979 = vld [vmem:[#allocation2 + $0x18] sm:$0xff]
        %v980 = vld [vmem:[#allocation2 + $0x20] sm:$0xff]
        %v981 = vld [vmem:[#allocation2 + $0x28] sm:$0xff]
        %v982 = vld [vmem:[#allocation2 + $0x30] sm:$0xff]
        %v983 = vld [vmem:[#allocation2 + $0x38] sm:$0xff]
        %v984 = vld [vmem:[#allocation10] sm:$0xff]
        %v985 = vld [vmem:[#allocation10 + $0x8] sm:$0xff]
        %v986 = vld [vmem:[#allocation10 + $0x10] sm:$0xff]
        %v987 = vld [vmem:[#allocation10 + $0x18] sm:$0xff]
        %v988 = vld [vmem:[#allocation10 + $0x20] sm:$0xff]
        %v989 = vld [vmem:[#allocation10 + $0x28] sm:$0xff]
        %v990 = vld [vmem:[#allocation10 + $0x30] sm:$0xff]
        %v991 = vld [vmem:[#allocation10 + $0x38] sm:$0xff]
        %v992 = vld [vmem:[#allocation10 + $0x40] sm:$0xff]
        %v993 = vld [vmem:[#allocation10 + $0x48] sm:$0xff]
        %v994 = vld [vmem:[#allocation10 + $0x50] sm:$0xff]
        %v995 = vld [vmem:[#allocation10 + $0x58] sm:$0xff]
        %v996 = vld [vmem:[#allocation10 + $0x60] sm:$0xff]
        %v997 = vld [vmem:[#allocation10 + $0x68] sm:$0xff]
        %v998 = vld [vmem:[#allocation10 + $0x70] sm:$0xff]
        %v999 = vld [vmem:[#allocation10 + $0x78] sm:$0xff]
        %v1000 = vld [vmem:[#allocation10 + $0x80] sm:$0xff]
        %v1001 = vld [vmem:[#allocation10 + $0x88] sm:$0xff]
        %v1002 = vld [vmem:[#allocation10 + $0x90] sm:$0xff]
        %v1003 = vld [vmem:[#allocation10 + $0x98] sm:$0xff]
        %v1004 = vld [vmem:[#allocation10 + $0xa0] sm:$0xff]
        %v1005 = vld [vmem:[#allocation10 + $0xa8] sm:$0xff]
        %v1006 = vld [vmem:[#allocation10 + $0xb0] sm:$0xff]
        %v1007 = vld [vmem:[#allocation10 + $0xb8] sm:$0xff]
        %v1008 = vld [vmem:[#allocation10 + $0xc0] sm:$0xff]
        %v1009 = vld [vmem:[#allocation10 + $0xc8] sm:$0xff]
        %v1010 = vld [vmem:[#allocation10 + $0xd0] sm:$0xff]
        %v1011 = vld [vmem:[#allocation10 + $0xd8] sm:$0xff]
        %v1012 = vld [vmem:[#allocation10 + $0xe0] sm:$0xff]
        %v1013 = vld [vmem:[#allocation10 + $0xe8] sm:$0xff]
        %v1014 = vld [vmem:[#allocation10 + $0xf0] sm:$0xff]
        %v1015 = vld [vmem:[#allocation10 + $0xf8] sm:$0xff]
        %v1016 = vld [vmem:[%s7] sm:$0x1]
        %v1018 = vlaneseq
        %v1019 = vshrl.u32 %v1018, 7
        %v1020 = vsub.s32 0, %v1019
        %v1021 = vrot.slane %v1016, %v1020
        %1023 = vmatprep.subr.mxu0 0.0
        %1024 = vmatpush1.msra.mxu0 %v984
        %1025 = vmatprep.subr.mxu0 0.0
        %1026 = vmatpush1.msra.mxu0 %v985
        %1027 = vmatprep.subr.mxu0 0.0
        %1028 = vmatpush1.msra.mxu0 %v986
        %1029 = vmatprep.subr.mxu0 0.0
        %1030 = vmatpush1.msra.mxu0 %v987
        %1031 = vmatprep.subr.mxu0 0.0
        %1032 = vmatpush1.msra.mxu0 %v988
        %1033 = vmatprep.subr.mxu0 0.0
        %1034 = vmatpush1.msra.mxu0 %v989
        %1035 = vmatprep.subr.mxu0 0.0
        %1036 = vmatpush1.msra.mxu0 %v990
        %1037 = vmatprep.subr.mxu0 0.0
        %1038 = vmatpush1.msra.mxu0 %v991
        %1039 = vmatprep.subr.mxu0 0.0
        %1040 = vmatpush1.msra.mxu0 %v992
        %1041 = vmatprep.subr.mxu0 0.0
        %1042 = vmatpush1.msra.mxu0 %v993
        %1043 = vmatprep.subr.mxu0 0.0
        %1044 = vmatpush1.msra.mxu0 %v994
        %1045 = vmatprep.subr.mxu0 0.0
        %1046 = vmatpush1.msra.mxu0 %v995
        %1047 = vmatprep.subr.mxu0 0.0
        %1048 = vmatpush1.msra.mxu0 %v996
        %1049 = vmatprep.subr.mxu0 0.0
        %1050 = vmatpush1.msra.mxu0 %v997
        %1051 = vmatprep.subr.mxu0 0.0
        %1052 = vmatpush1.msra.mxu0 %v998
        %1053 = vmatprep.subr.mxu0 0.0
        %1054 = vmatpush1.msra.mxu0 %v999
        %1055 = vmatprep.subr.mxu0 0.0
        %1056 = vmatpush1.msra.mxu0 %v1000
        %1057 = vmatprep.subr.mxu0 0.0
        %1058 = vmatpush1.msra.mxu0 %v1001
        %1059 = vmatprep.subr.mxu0 0.0
        %1060 = vmatpush1.msra.mxu0 %v1002
        %1061 = vmatprep.subr.mxu0 0.0
        %1062 = vmatpush1.msra.mxu0 %v1003
        %1063 = vmatprep.subr.mxu0 0.0
        %1064 = vmatpush1.msra.mxu0 %v1004
        %1065 = vmatprep.subr.mxu0 0.0
        %1066 = vmatpush1.msra.mxu0 %v1005
        %1067 = vmatprep.subr.mxu0 0.0
        %1068 = vmatpush1.msra.mxu0 %v1006
        %1069 = vmatprep.subr.mxu0 0.0
        %1070 = vmatpush1.msra.mxu0 %v1007
        %1071 = vmatprep.subr.mxu0 0.0
        %1072 = vmatpush1.msra.mxu0 %v1008
        %1073 = vmatprep.subr.mxu0 0.0
        %1074 = vmatpush1.msra.mxu0 %v1009
        %1075 = vmatprep.subr.mxu0 0.0
        %1076 = vmatpush1.msra.mxu0 %v1010
        %1077 = vmatprep.subr.mxu0 0.0
        %1078 = vmatpush1.msra.mxu0 %v1011
        %1079 = vmatprep.subr.mxu0 0.0
        %1080 = vmatpush1.msra.mxu0 %v1012
        %1081 = vmatprep.subr.mxu0 0.0
        %1082 = vmatpush1.msra.mxu0 %v1013
        %1083 = vmatprep.subr.mxu0 0.0
        %1084 = vmatpush1.msra.mxu0 %v1014
        %1085 = vmatprep.subr.mxu0 0.0
        %1086 = vmatpush1.msra.mxu0 %v1015
        %1087 = vmatprep.mubr.f32.mxu0 %v977
        %1088 = vmatmul.mubr.f32.gmra.mrb[0].mxu0 %v976
        %v1089 = vpop.f32.mrb[0].mxu0
        %v1090 = vadd.f32 %v1021, %v1089
        %v1091 = vpop.f32.mrb[0].mxu0
        %1092 = vmatprep.mubr.f32.mxu0 %v979
        %1093 = vmatmul.mubr.f32.gmra.mrb[0].mxu0 %v978
        %v1094 = vpop.f32.mrb[0].mxu0
        %v1095 = vadd.f32 %v1021, %v1094
        %v1096 = vpop.f32.mrb[0].mxu0
        %1097 = vmatprep.mubr.f32.mxu0 %v981
        %1098 = vmatmul.mubr.f32.gmra.mrb[0].mxu0 %v980
        %v1099 = vpop.f32.mrb[0].mxu0
        %v1100 = vadd.f32 %v1021, %v1099
        %v1101 = vpop.f32.mrb[0].mxu0
        %1102 = vmatprep.mubr.f32.mxu0 %v983
        %1103 = vmatmul.mubr.f32.gmra.mrb[0].mxu0 %v982
        %v1104 = vpop.f32.mrb[0].mxu0
        %v1105 = vadd.f32 %v1021, %v1104
        %v1106 = vpop.f32.mrb[0].mxu0
        %1107 = vdwg.mxu0
        %1108 = vst [vmem:[%s397] sm:$0xff] %v1090
        %1109 = vst [vmem:[%s397 + $0x8] sm:$0xff] %v1095
        %1110 = vst [vmem:[%s397 + $0x10] sm:$0xff] %v1100
        %1111 = vst [vmem:[%s397 + $0x18] sm:$0xff] %v1105
        %s1112 = sand.u32 %s229, 1
        %s1113 = scalar_lea.sflag [#allocation6], %s1112
        %s1114 = sand.u32 %s229, 1
        %s1115 = smul.addr %s1114, 32
        %s1116 = scalar_lea.vmem [#allocation12], %s1115
        // Predicated region
        $region73: #{tpu_custom_call.1} parent=51 // pred_check
          %p1117 = pneg %p239
        $region74: #{tpu_custom_call.1} parent=51 // pred_check_branch
          %1119 = sbr.rel (%p1117) target = $region76
        $region75: #{tpu_custom_call.1} parent=51 // pred_region
          %s1120 = smul.u32 4, %s32
          %s1122 = ssub.s32 512, 512
          %1123 = vsyncadd %s1113, %s1122
          %s1124 = sadd.s32 %s31, %s1120
          %s1125 = smul.addr %s1124, 128
          %s1126 = scalar_lea.hbm %s8, %s1125
          %s1127 = sshll.u32 %s1116, 4
          %s1128 = int_to_ptr.vmem [resolvable:$true] %s1127
          %1133 = dma.vmem_to_hbm [thread:$0]  %s1128, 512, %s1126, %s1113, 128, 128, 8
        $region76: #{tpu_custom_call.1} parent=51 // pred_fallthru
          _
      $region52: #{tpu_custom_call.1} parent=5 // pred_fallthru
        _
      %p1134 = scmp.le.s32.totalorder 2, %s22
      // Predicated region
      $region77: #{tpu_custom_call.1} parent=5 // pred_check
        %p1135 = pneg %p1134
      $region78: #{tpu_custom_call.1} parent=5 // pred_check_branch
        %1137 = sbr.rel (%p1135) target = $region80
      $region79: #{tpu_custom_call.1} parent=5 // pred_region
        %s1138 = ssub.s32 %s22, 2
        // Predicated region
        $region81: #{tpu_custom_call.1} parent=79 // pred_check
          %p1139 = pneg %p245
        $region82: #{tpu_custom_call.1} parent=79 // pred_check_branch
          %1141 = sbr.rel (%p1139) target = $region84
        $region83: #{tpu_custom_call.1} parent=79 // pred_region
          %s1142 = sand.u32 %s230, 1
          %s1143 = scalar_lea.sflag [#allocation6], %s1142
          %s1144 = sand.u32 %s230, 1
          %s1145 = smul.addr %s1144, 32
          %s1146 = scalar_lea.vmem [#allocation12], %s1145
          %1147 = dma.done %s1143, 512
        $region84: #{tpu_custom_call.1} parent=79 // pred_fallthru
          _
      $region80: #{tpu_custom_call.1} parent=5 // pred_fallthru
        _
    $region6: #{tpu_custom_call.1} parent=1 // loop_footer
      %s26 = sadd.s32 1, %s22
    $region7: #{tpu_custom_call.1} parent=1 // loop_footer_branch
      %21 = sbr.rel target = $region3
    $region8: #{tpu_custom_call.1} parent=1 // loop_exit
      _
    %1148 = vsyncpa [#allocation5], 1
    %s1149 = scalar_lea.sflag [#allocation5], 1
    %1150 = vsyncpa %s1149, 1
    %1151 = vsyncpa [#allocation8], 1
    %1152 = vsyncpa [#allocation11], 1
    %1153 = vsyncpa [#allocation6], 1
    %s1154 = scalar_lea.sflag [#allocation6], 1
    %1155 = vsyncpa %s1154, 1

</llo_original>
